<compile_context>
chip_gen: v5e
topology: v5e:2x2
jax: 0.10.0
libtpu: 0.0.40
codegen_flags: <defaults>
</compile_context>

<pallas_src>
import functools

import jax
import jax.numpy as jnp
from jax.experimental import pallas as pl
from jax.experimental.pallas import tpu as pltpu


# (in_features, out_features) per layer — mirrors the PyTorch module.
_LAYER_DIMS = ((8, 8), (8, 4), (4, 2), (2, 2))
_LANE = 128


def _packed_offsets():
    """Offsets of each layer's weights/biases inside the packed parameter vector."""
    layout = []
    off = 0
    for (fi, fo) in _LAYER_DIMS:
        w_off = off
        off += fi * fo
        b_off = off
        off += fo
        layout.append((w_off, b_off, fi, fo))
    return tuple(layout), off


_PACK_LAYOUT, _PACK_SIZE = _packed_offsets()


def _sigmoid(h):
    # exp on EUP + approximate reciprocal on EUP (separate VLIW slot -> ~free here).
    return pl.reciprocal(1.0 + jnp.exp(-h), approx=True)


def mlp_kernel(p_ref, x_ref, o_ref):
    # p_ref: (124,) f32 in SMEM   x_ref: (8, T, 128)   o_ref: (2, T, 128)
    in_f0 = _LAYER_DIMS[0][0]
    # Per-feature activation slabs, each a dense (T, 128) block (full vregs).
    rows = [x_ref[i].astype(jnp.float32) for i in range(in_f0)]

    n_layers = len(_PACK_LAYOUT)
    for li, (w_off, b_off, in_f, out_f) in enumerate(_PACK_LAYOUT):
        new_rows = []
        for o in range(out_f):
            # Weight scalar w[o, i] lives at p_ref[w_off + o*in_f + i] (PyTorch (out,in)).
            base = w_off + o * in_f
            acc = rows[0] * p_ref[base] + p_ref[b_off + o]
            for i in range(1, in_f):
                acc = acc + rows[i] * p_ref[base + i]
            new_rows.append(acc)
        if li < n_layers - 1:
            new_rows = [_sigmoid(r) for r in new_rows]
        # TODO(synk): ops.iree.trace_tensor(f'LAYER{li}', ...) is IREE runtime tracing
        # with no Pallas equivalent — omitted.
        rows = new_rows

    for o, r in enumerate(rows):
        o_ref[o] = r.astype(o_ref.dtype)


def _round_up(n, m):
    return (n + m - 1) // m * m


def pack_params(params):
    """Flatten PyTorch-layout (out, in) weights + (out,) biases into one f32 vector."""
    pieces = []
    for (w, b) in params:
        pieces.append(jnp.asarray(w, jnp.float32).reshape(-1))
        pieces.append(jnp.asarray(b, jnp.float32).reshape(-1))
    packed = jnp.concatenate(pieces)
    assert packed.shape == (_PACK_SIZE,)
    return packed


@functools.partial(jax.jit, static_argnames=("tile_b",))
def mlp_forward(x, packed_params, *, tile_b=2048):
    B, F = x.shape
    assert F == _LAYER_DIMS[0][0]
    out_f = _LAYER_DIMS[-1][1]
    assert tile_b % 1024 == 0, "tile_b must be a multiple of 1024 (8 sublanes x 128 lanes)"

    # Single-block case may be any multiple of 128 (block == full extent); the
    # multi-block case keeps the sublane dim a multiple of 8 (tile_b % 1024 == 0).
    ru = _round_up(B, _LANE)
    tile = ru if ru <= tile_b else tile_b
    Bp = _round_up(B, tile)
    nb = Bp // tile
    T = tile // _LANE

    # Feature-major, lane+sublane-dense layout: (F, Bp//128, 128).
    xt = x.T
    if Bp != B:
        xt = jnp.pad(xt, ((0, 0), (0, Bp - B)))
    xr = xt.reshape(F, Bp // _LANE, _LANE)

    out_r = pl.pallas_call(
        mlp_kernel,
        out_shape=jax.ShapeDtypeStruct((out_f, Bp // _LANE, _LANE), x.dtype),
        grid=(nb,),
        in_specs=[
            # All parameters in one small SMEM-resident buffer (one copy, scalar reads).
            pl.BlockSpec(memory_space=pltpu.MemorySpace.SMEM),
            # Activations: full feature extent x (T,128) batch slab, pipelined over batch.
            pl.BlockSpec((F, T, _LANE), lambda i: (0, i, 0)),
        ],
        out_specs=pl.BlockSpec((out_f, T, _LANE), lambda i: (0, i, 0)),
        compiler_params=pltpu.CompilerParams(
            dimension_semantics=("parallel",)),
    )(packed_params, xr)

    return out_r.reshape(out_f, Bp)[:, :B].T                  # back to [B, 2]


def init_params(key):
    """Deterministic init matching nn.Linear: weight (out, in), bias (out,)."""
    params = []
    for (fan_in, fan_out) in _LAYER_DIMS:
        key, kw, kb = jax.random.split(key, 3)
        bound = 1.0 / (fan_in ** 0.5)
        w = jax.random.uniform(kw, (fan_out, fan_in), jnp.float32, -bound, bound)
        b = jax.random.uniform(kb, (fan_out,), jnp.float32, -bound, bound)
        params.append((w, b))
    return params


def mlp_reference(x, params):
    h = x
    for i, (w, b) in enumerate(params):
        h = h @ w.T + b
        if i < len(params) - 1:
            h = jax.nn.sigmoid(h)
    return h


if __name__ == "__main__":
    key = jax.random.PRNGKey(0)
    key, kx = jax.random.split(key)

    B = 3000  # exercises both a 2-step grid (tile=2048) and batch padding
    x = jax.random.normal(kx, (B, 8), jnp.float32)

    params = init_params(key)
    packed = pack_params(params)

    out = mlp_forward(x, packed)
    out = jax.block_until_ready(out)

    ref = mlp_reference(x, params)
    assert out.shape == (B, 2)
    # approx=True reciprocal in the sigmoid -> slightly looser tolerance than exact f32.
    err = float(jnp.max(jnp.abs(out - ref)))
    assert jnp.allclose(out, ref, atol=3e-3, rtol=3e-3), err

    print("KERNEL_OK")
</pallas_src>

<mosaic_0001>
module attributes {stable_mosaic.version = 11 : i64} {
  func.func @mlp_kernel(%arg0: i32, %arg1: memref<124xf32, #tpu.memory_space<smem>>, %arg2: memref<8x16x128xf32, #tpu.memory_space<vmem>>, %arg3: memref<2x16x128xf32, #tpu.memory_space<vmem>>) attributes {dimension_semantics = [#tpu.dimension_semantics<parallel>], iteration_bounds = array<i64: 2>, scalar_prefetch = 0 : i64, scratch_operands = 0 : i64, tpu.core_type = #tpu.core_type<tc>, window_params = [{transform_indices = @transform_0, window_bounds = array<i64: 124>}, {transform_indices = @transform_1, window_bounds = array<i64: 8, 16, 128>}, {transform_indices = @transform_2, window_bounds = array<i64: 2, 16, 128>}]} {
    %c0 = arith.constant 0 : index
    %c0_0 = arith.constant 0 : index
    %c0_1 = arith.constant 0 : index
    %0 = vector.load %arg2[%c0, %c0_0, %c0_1] : memref<8x16x128xf32, #tpu.memory_space<vmem>>, vector<1x16x128xf32>
    %1 = vector.shape_cast %0 : vector<1x16x128xf32> to vector<16x128xf32>
    %c1 = arith.constant 1 : index
    %c0_2 = arith.constant 0 : index
    %c0_3 = arith.constant 0 : index
    %2 = vector.load %arg2[%c1, %c0_2, %c0_3] : memref<8x16x128xf32, #tpu.memory_space<vmem>>, vector<1x16x128xf32>
    %3 = vector.shape_cast %2 : vector<1x16x128xf32> to vector<16x128xf32>
    %c2 = arith.constant 2 : index
    %c0_4 = arith.constant 0 : index
    %c0_5 = arith.constant 0 : index
    %4 = vector.load %arg2[%c2, %c0_4, %c0_5] : memref<8x16x128xf32, #tpu.memory_space<vmem>>, vector<1x16x128xf32>
    %5 = vector.shape_cast %4 : vector<1x16x128xf32> to vector<16x128xf32>
    %c3 = arith.constant 3 : index
    %c0_6 = arith.constant 0 : index
    %c0_7 = arith.constant 0 : index
    %6 = vector.load %arg2[%c3, %c0_6, %c0_7] : memref<8x16x128xf32, #tpu.memory_space<vmem>>, vector<1x16x128xf32>
    %7 = vector.shape_cast %6 : vector<1x16x128xf32> to vector<16x128xf32>
    %c4 = arith.constant 4 : index
    %c0_8 = arith.constant 0 : index
    %c0_9 = arith.constant 0 : index
    %8 = vector.load %arg2[%c4, %c0_8, %c0_9] : memref<8x16x128xf32, #tpu.memory_space<vmem>>, vector<1x16x128xf32>
    %9 = vector.shape_cast %8 : vector<1x16x128xf32> to vector<16x128xf32>
    %c5 = arith.constant 5 : index
    %c0_10 = arith.constant 0 : index
    %c0_11 = arith.constant 0 : index
    %10 = vector.load %arg2[%c5, %c0_10, %c0_11] : memref<8x16x128xf32, #tpu.memory_space<vmem>>, vector<1x16x128xf32>
    %11 = vector.shape_cast %10 : vector<1x16x128xf32> to vector<16x128xf32>
    %c6 = arith.constant 6 : index
    %c0_12 = arith.constant 0 : index
    %c0_13 = arith.constant 0 : index
    %12 = vector.load %arg2[%c6, %c0_12, %c0_13] : memref<8x16x128xf32, #tpu.memory_space<vmem>>, vector<1x16x128xf32>
    %13 = vector.shape_cast %12 : vector<1x16x128xf32> to vector<16x128xf32>
    %c7 = arith.constant 7 : index
    %c0_14 = arith.constant 0 : index
    %c0_15 = arith.constant 0 : index
    %14 = vector.load %arg2[%c7, %c0_14, %c0_15] : memref<8x16x128xf32, #tpu.memory_space<vmem>>, vector<1x16x128xf32>
    %15 = vector.shape_cast %14 : vector<1x16x128xf32> to vector<16x128xf32>
    %c0_16 = arith.constant 0 : index
    %16 = memref.load %arg1[%c0_16] : memref<124xf32, #tpu.memory_space<smem>>
    %17 = vector.broadcast %16 : f32 to vector<16x128xf32>
    %18 = arith.mulf %1, %17 : vector<16x128xf32>
    %c64 = arith.constant 64 : index
    %19 = memref.load %arg1[%c64] : memref<124xf32, #tpu.memory_space<smem>>
    %20 = vector.broadcast %19 : f32 to vector<16x128xf32>
    %21 = arith.addf %18, %20 : vector<16x128xf32>
    %c1_17 = arith.constant 1 : index
    %22 = memref.load %arg1[%c1_17] : memref<124xf32, #tpu.memory_space<smem>>
    %23 = vector.broadcast %22 : f32 to vector<16x128xf32>
    %24 = arith.mulf %3, %23 : vector<16x128xf32>
    %25 = arith.addf %21, %24 : vector<16x128xf32>
    %c2_18 = arith.constant 2 : index
    %26 = memref.load %arg1[%c2_18] : memref<124xf32, #tpu.memory_space<smem>>
    %27 = vector.broadcast %26 : f32 to vector<16x128xf32>
    %28 = arith.mulf %5, %27 : vector<16x128xf32>
    %29 = arith.addf %25, %28 : vector<16x128xf32>
    %c3_19 = arith.constant 3 : index
    %30 = memref.load %arg1[%c3_19] : memref<124xf32, #tpu.memory_space<smem>>
    %31 = vector.broadcast %30 : f32 to vector<16x128xf32>
    %32 = arith.mulf %7, %31 : vector<16x128xf32>
    %33 = arith.addf %29, %32 : vector<16x128xf32>
    %c4_20 = arith.constant 4 : index
    %34 = memref.load %arg1[%c4_20] : memref<124xf32, #tpu.memory_space<smem>>
    %35 = vector.broadcast %34 : f32 to vector<16x128xf32>
    %36 = arith.mulf %9, %35 : vector<16x128xf32>
    %37 = arith.addf %33, %36 : vector<16x128xf32>
    %c5_21 = arith.constant 5 : index
    %38 = memref.load %arg1[%c5_21] : memref<124xf32, #tpu.memory_space<smem>>
    %39 = vector.broadcast %38 : f32 to vector<16x128xf32>
    %40 = arith.mulf %11, %39 : vector<16x128xf32>
    %41 = arith.addf %37, %40 : vector<16x128xf32>
    %c6_22 = arith.constant 6 : index
    %42 = memref.load %arg1[%c6_22] : memref<124xf32, #tpu.memory_space<smem>>
    %43 = vector.broadcast %42 : f32 to vector<16x128xf32>
    %44 = arith.mulf %13, %43 : vector<16x128xf32>
    %45 = arith.addf %41, %44 : vector<16x128xf32>
    %c7_23 = arith.constant 7 : index
    %46 = memref.load %arg1[%c7_23] : memref<124xf32, #tpu.memory_space<smem>>
    %47 = vector.broadcast %46 : f32 to vector<16x128xf32>
    %48 = arith.mulf %15, %47 : vector<16x128xf32>
    %49 = arith.addf %45, %48 : vector<16x128xf32>
    %c8 = arith.constant 8 : index
    %50 = memref.load %arg1[%c8] : memref<124xf32, #tpu.memory_space<smem>>
    %51 = vector.broadcast %50 : f32 to vector<16x128xf32>
    %52 = arith.mulf %1, %51 : vector<16x128xf32>
    %c65 = arith.constant 65 : index
    %53 = memref.load %arg1[%c65] : memref<124xf32, #tpu.memory_space<smem>>
    %54 = vector.broadcast %53 : f32 to vector<16x128xf32>
    %55 = arith.addf %52, %54 : vector<16x128xf32>
    %c9 = arith.constant 9 : index
    %56 = memref.load %arg1[%c9] : memref<124xf32, #tpu.memory_space<smem>>
    %57 = vector.broadcast %56 : f32 to vector<16x128xf32>
    %58 = arith.mulf %3, %57 : vector<16x128xf32>
    %59 = arith.addf %55, %58 : vector<16x128xf32>
    %c10 = arith.constant 10 : index
    %60 = memref.load %arg1[%c10] : memref<124xf32, #tpu.memory_space<smem>>
    %61 = vector.broadcast %60 : f32 to vector<16x128xf32>
    %62 = arith.mulf %5, %61 : vector<16x128xf32>
    %63 = arith.addf %59, %62 : vector<16x128xf32>
    %c11 = arith.constant 11 : index
    %64 = memref.load %arg1[%c11] : memref<124xf32, #tpu.memory_space<smem>>
    %65 = vector.broadcast %64 : f32 to vector<16x128xf32>
    %66 = arith.mulf %7, %65 : vector<16x128xf32>
    %67 = arith.addf %63, %66 : vector<16x128xf32>
    %c12 = arith.constant 12 : index
    %68 = memref.load %arg1[%c12] : memref<124xf32, #tpu.memory_space<smem>>
    %69 = vector.broadcast %68 : f32 to vector<16x128xf32>
    %70 = arith.mulf %9, %69 : vector<16x128xf32>
    %71 = arith.addf %67, %70 : vector<16x128xf32>
    %c13 = arith.constant 13 : index
    %72 = memref.load %arg1[%c13] : memref<124xf32, #tpu.memory_space<smem>>
    %73 = vector.broadcast %72 : f32 to vector<16x128xf32>
    %74 = arith.mulf %11, %73 : vector<16x128xf32>
    %75 = arith.addf %71, %74 : vector<16x128xf32>
    %c14 = arith.constant 14 : index
    %76 = memref.load %arg1[%c14] : memref<124xf32, #tpu.memory_space<smem>>
    %77 = vector.broadcast %76 : f32 to vector<16x128xf32>
    %78 = arith.mulf %13, %77 : vector<16x128xf32>
    %79 = arith.addf %75, %78 : vector<16x128xf32>
    %c15 = arith.constant 15 : index
    %80 = memref.load %arg1[%c15] : memref<124xf32, #tpu.memory_space<smem>>
    %81 = vector.broadcast %80 : f32 to vector<16x128xf32>
    %82 = arith.mulf %15, %81 : vector<16x128xf32>
    %83 = arith.addf %79, %82 : vector<16x128xf32>
    %c16 = arith.constant 16 : index
    %84 = memref.load %arg1[%c16] : memref<124xf32, #tpu.memory_space<smem>>
    %85 = vector.broadcast %84 : f32 to vector<16x128xf32>
    %86 = arith.mulf %1, %85 : vector<16x128xf32>
    %c66 = arith.constant 66 : index
    %87 = memref.load %arg1[%c66] : memref<124xf32, #tpu.memory_space<smem>>
    %88 = vector.broadcast %87 : f32 to vector<16x128xf32>
    %89 = arith.addf %86, %88 : vector<16x128xf32>
    %c17 = arith.constant 17 : index
    %90 = memref.load %arg1[%c17] : memref<124xf32, #tpu.memory_space<smem>>
    %91 = vector.broadcast %90 : f32 to vector<16x128xf32>
    %92 = arith.mulf %3, %91 : vector<16x128xf32>
    %93 = arith.addf %89, %92 : vector<16x128xf32>
    %c18 = arith.constant 18 : index
    %94 = memref.load %arg1[%c18] : memref<124xf32, #tpu.memory_space<smem>>
    %95 = vector.broadcast %94 : f32 to vector<16x128xf32>
    %96 = arith.mulf %5, %95 : vector<16x128xf32>
    %97 = arith.addf %93, %96 : vector<16x128xf32>
    %c19 = arith.constant 19 : index
    %98 = memref.load %arg1[%c19] : memref<124xf32, #tpu.memory_space<smem>>
    %99 = vector.broadcast %98 : f32 to vector<16x128xf32>
    %100 = arith.mulf %7, %99 : vector<16x128xf32>
    %101 = arith.addf %97, %100 : vector<16x128xf32>
    %c20 = arith.constant 20 : index
    %102 = memref.load %arg1[%c20] : memref<124xf32, #tpu.memory_space<smem>>
    %103 = vector.broadcast %102 : f32 to vector<16x128xf32>
    %104 = arith.mulf %9, %103 : vector<16x128xf32>
    %105 = arith.addf %101, %104 : vector<16x128xf32>
    %c21 = arith.constant 21 : index
    %106 = memref.load %arg1[%c21] : memref<124xf32, #tpu.memory_space<smem>>
    %107 = vector.broadcast %106 : f32 to vector<16x128xf32>
    %108 = arith.mulf %11, %107 : vector<16x128xf32>
    %109 = arith.addf %105, %108 : vector<16x128xf32>
    %c22 = arith.constant 22 : index
    %110 = memref.load %arg1[%c22] : memref<124xf32, #tpu.memory_space<smem>>
    %111 = vector.broadcast %110 : f32 to vector<16x128xf32>
    %112 = arith.mulf %13, %111 : vector<16x128xf32>
    %113 = arith.addf %109, %112 : vector<16x128xf32>
    %c23 = arith.constant 23 : index
    %114 = memref.load %arg1[%c23] : memref<124xf32, #tpu.memory_space<smem>>
    %115 = vector.broadcast %114 : f32 to vector<16x128xf32>
    %116 = arith.mulf %15, %115 : vector<16x128xf32>
    %117 = arith.addf %113, %116 : vector<16x128xf32>
    %c24 = arith.constant 24 : index
    %118 = memref.load %arg1[%c24] : memref<124xf32, #tpu.memory_space<smem>>
    %119 = vector.broadcast %118 : f32 to vector<16x128xf32>
    %120 = arith.mulf %1, %119 : vector<16x128xf32>
    %c67 = arith.constant 67 : index
    %121 = memref.load %arg1[%c67] : memref<124xf32, #tpu.memory_space<smem>>
    %122 = vector.broadcast %121 : f32 to vector<16x128xf32>
    %123 = arith.addf %120, %122 : vector<16x128xf32>
    %c25 = arith.constant 25 : index
    %124 = memref.load %arg1[%c25] : memref<124xf32, #tpu.memory_space<smem>>
    %125 = vector.broadcast %124 : f32 to vector<16x128xf32>
    %126 = arith.mulf %3, %125 : vector<16x128xf32>
    %127 = arith.addf %123, %126 : vector<16x128xf32>
    %c26 = arith.constant 26 : index
    %128 = memref.load %arg1[%c26] : memref<124xf32, #tpu.memory_space<smem>>
    %129 = vector.broadcast %128 : f32 to vector<16x128xf32>
    %130 = arith.mulf %5, %129 : vector<16x128xf32>
    %131 = arith.addf %127, %130 : vector<16x128xf32>
    %c27 = arith.constant 27 : index
    %132 = memref.load %arg1[%c27] : memref<124xf32, #tpu.memory_space<smem>>
    %133 = vector.broadcast %132 : f32 to vector<16x128xf32>
    %134 = arith.mulf %7, %133 : vector<16x128xf32>
    %135 = arith.addf %131, %134 : vector<16x128xf32>
    %c28 = arith.constant 28 : index
    %136 = memref.load %arg1[%c28] : memref<124xf32, #tpu.memory_space<smem>>
    %137 = vector.broadcast %136 : f32 to vector<16x128xf32>
    %138 = arith.mulf %9, %137 : vector<16x128xf32>
    %139 = arith.addf %135, %138 : vector<16x128xf32>
    %c29 = arith.constant 29 : index
    %140 = memref.load %arg1[%c29] : memref<124xf32, #tpu.memory_space<smem>>
    %141 = vector.broadcast %140 : f32 to vector<16x128xf32>
    %142 = arith.mulf %11, %141 : vector<16x128xf32>
    %143 = arith.addf %139, %142 : vector<16x128xf32>
    %c30 = arith.constant 30 : index
    %144 = memref.load %arg1[%c30] : memref<124xf32, #tpu.memory_space<smem>>
    %145 = vector.broadcast %144 : f32 to vector<16x128xf32>
    %146 = arith.mulf %13, %145 : vector<16x128xf32>
    %147 = arith.addf %143, %146 : vector<16x128xf32>
    %c31 = arith.constant 31 : index
    %148 = memref.load %arg1[%c31] : memref<124xf32, #tpu.memory_space<smem>>
    %149 = vector.broadcast %148 : f32 to vector<16x128xf32>
    %150 = arith.mulf %15, %149 : vector<16x128xf32>
    %151 = arith.addf %147, %150 : vector<16x128xf32>
    %c32 = arith.constant 32 : index
    %152 = memref.load %arg1[%c32] : memref<124xf32, #tpu.memory_space<smem>>
    %153 = vector.broadcast %152 : f32 to vector<16x128xf32>
    %154 = arith.mulf %1, %153 : vector<16x128xf32>
    %c68 = arith.constant 68 : index
    %155 = memref.load %arg1[%c68] : memref<124xf32, #tpu.memory_space<smem>>
    %156 = vector.broadcast %155 : f32 to vector<16x128xf32>
    %157 = arith.addf %154, %156 : vector<16x128xf32>
    %c33 = arith.constant 33 : index
    %158 = memref.load %arg1[%c33] : memref<124xf32, #tpu.memory_space<smem>>
    %159 = vector.broadcast %158 : f32 to vector<16x128xf32>
    %160 = arith.mulf %3, %159 : vector<16x128xf32>
    %161 = arith.addf %157, %160 : vector<16x128xf32>
    %c34 = arith.constant 34 : index
    %162 = memref.load %arg1[%c34] : memref<124xf32, #tpu.memory_space<smem>>
    %163 = vector.broadcast %162 : f32 to vector<16x128xf32>
    %164 = arith.mulf %5, %163 : vector<16x128xf32>
    %165 = arith.addf %161, %164 : vector<16x128xf32>
    %c35 = arith.constant 35 : index
    %166 = memref.load %arg1[%c35] : memref<124xf32, #tpu.memory_space<smem>>
    %167 = vector.broadcast %166 : f32 to vector<16x128xf32>
    %168 = arith.mulf %7, %167 : vector<16x128xf32>
    %169 = arith.addf %165, %168 : vector<16x128xf32>
    %c36 = arith.constant 36 : index
    %170 = memref.load %arg1[%c36] : memref<124xf32, #tpu.memory_space<smem>>
    %171 = vector.broadcast %170 : f32 to vector<16x128xf32>
    %172 = arith.mulf %9, %171 : vector<16x128xf32>
    %173 = arith.addf %169, %172 : vector<16x128xf32>
    %c37 = arith.constant 37 : index
    %174 = memref.load %arg1[%c37] : memref<124xf32, #tpu.memory_space<smem>>
    %175 = vector.broadcast %174 : f32 to vector<16x128xf32>
    %176 = arith.mulf %11, %175 : vector<16x128xf32>
    %177 = arith.addf %173, %176 : vector<16x128xf32>
    %c38 = arith.constant 38 : index
    %178 = memref.load %arg1[%c38] : memref<124xf32, #tpu.memory_space<smem>>
    %179 = vector.broadcast %178 : f32 to vector<16x128xf32>
    %180 = arith.mulf %13, %179 : vector<16x128xf32>
    %181 = arith.addf %177, %180 : vector<16x128xf32>
    %c39 = arith.constant 39 : index
    %182 = memref.load %arg1[%c39] : memref<124xf32, #tpu.memory_space<smem>>
    %183 = vector.broadcast %182 : f32 to vector<16x128xf32>
    %184 = arith.mulf %15, %183 : vector<16x128xf32>
    %185 = arith.addf %181, %184 : vector<16x128xf32>
    %c40 = arith.constant 40 : index
    %186 = memref.load %arg1[%c40] : memref<124xf32, #tpu.memory_space<smem>>
    %187 = vector.broadcast %186 : f32 to vector<16x128xf32>
    %188 = arith.mulf %1, %187 : vector<16x128xf32>
    %c69 = arith.constant 69 : index
    %189 = memref.load %arg1[%c69] : memref<124xf32, #tpu.memory_space<smem>>
    %190 = vector.broadcast %189 : f32 to vector<16x128xf32>
    %191 = arith.addf %188, %190 : vector<16x128xf32>
    %c41 = arith.constant 41 : index
    %192 = memref.load %arg1[%c41] : memref<124xf32, #tpu.memory_space<smem>>
    %193 = vector.broadcast %192 : f32 to vector<16x128xf32>
    %194 = arith.mulf %3, %193 : vector<16x128xf32>
    %195 = arith.addf %191, %194 : vector<16x128xf32>
    %c42 = arith.constant 42 : index
    %196 = memref.load %arg1[%c42] : memref<124xf32, #tpu.memory_space<smem>>
    %197 = vector.broadcast %196 : f32 to vector<16x128xf32>
    %198 = arith.mulf %5, %197 : vector<16x128xf32>
    %199 = arith.addf %195, %198 : vector<16x128xf32>
    %c43 = arith.constant 43 : index
    %200 = memref.load %arg1[%c43] : memref<124xf32, #tpu.memory_space<smem>>
    %201 = vector.broadcast %200 : f32 to vector<16x128xf32>
    %202 = arith.mulf %7, %201 : vector<16x128xf32>
    %203 = arith.addf %199, %202 : vector<16x128xf32>
    %c44 = arith.constant 44 : index
    %204 = memref.load %arg1[%c44] : memref<124xf32, #tpu.memory_space<smem>>
    %205 = vector.broadcast %204 : f32 to vector<16x128xf32>
    %206 = arith.mulf %9, %205 : vector<16x128xf32>
    %207 = arith.addf %203, %206 : vector<16x128xf32>
    %c45 = arith.constant 45 : index
    %208 = memref.load %arg1[%c45] : memref<124xf32, #tpu.memory_space<smem>>
    %209 = vector.broadcast %208 : f32 to vector<16x128xf32>
    %210 = arith.mulf %11, %209 : vector<16x128xf32>
    %211 = arith.addf %207, %210 : vector<16x128xf32>
    %c46 = arith.constant 46 : index
    %212 = memref.load %arg1[%c46] : memref<124xf32, #tpu.memory_space<smem>>
    %213 = vector.broadcast %212 : f32 to vector<16x128xf32>
    %214 = arith.mulf %13, %213 : vector<16x128xf32>
    %215 = arith.addf %211, %214 : vector<16x128xf32>
    %c47 = arith.constant 47 : index
    %216 = memref.load %arg1[%c47] : memref<124xf32, #tpu.memory_space<smem>>
    %217 = vector.broadcast %216 : f32 to vector<16x128xf32>
    %218 = arith.mulf %15, %217 : vector<16x128xf32>
    %219 = arith.addf %215, %218 : vector<16x128xf32>
    %c48 = arith.constant 48 : index
    %220 = memref.load %arg1[%c48] : memref<124xf32, #tpu.memory_space<smem>>
    %221 = vector.broadcast %220 : f32 to vector<16x128xf32>
    %222 = arith.mulf %1, %221 : vector<16x128xf32>
    %c70 = arith.constant 70 : index
    %223 = memref.load %arg1[%c70] : memref<124xf32, #tpu.memory_space<smem>>
    %224 = vector.broadcast %223 : f32 to vector<16x128xf32>
    %225 = arith.addf %222, %224 : vector<16x128xf32>
    %c49 = arith.constant 49 : index
    %226 = memref.load %arg1[%c49] : memref<124xf32, #tpu.memory_space<smem>>
    %227 = vector.broadcast %226 : f32 to vector<16x128xf32>
    %228 = arith.mulf %3, %227 : vector<16x128xf32>
    %229 = arith.addf %225, %228 : vector<16x128xf32>
    %c50 = arith.constant 50 : index
    %230 = memref.load %arg1[%c50] : memref<124xf32, #tpu.memory_space<smem>>
    %231 = vector.broadcast %230 : f32 to vector<16x128xf32>
    %232 = arith.mulf %5, %231 : vector<16x128xf32>
    %233 = arith.addf %229, %232 : vector<16x128xf32>
    %c51 = arith.constant 51 : index
    %234 = memref.load %arg1[%c51] : memref<124xf32, #tpu.memory_space<smem>>
    %235 = vector.broadcast %234 : f32 to vector<16x128xf32>
    %236 = arith.mulf %7, %235 : vector<16x128xf32>
    %237 = arith.addf %233, %236 : vector<16x128xf32>
    %c52 = arith.constant 52 : index
    %238 = memref.load %arg1[%c52] : memref<124xf32, #tpu.memory_space<smem>>
    %239 = vector.broadcast %238 : f32 to vector<16x128xf32>
    %240 = arith.mulf %9, %239 : vector<16x128xf32>
    %241 = arith.addf %237, %240 : vector<16x128xf32>
    %c53 = arith.constant 53 : index
    %242 = memref.load %arg1[%c53] : memref<124xf32, #tpu.memory_space<smem>>
    %243 = vector.broadcast %242 : f32 to vector<16x128xf32>
    %244 = arith.mulf %11, %243 : vector<16x128xf32>
    %245 = arith.addf %241, %244 : vector<16x128xf32>
    %c54 = arith.constant 54 : index
    %246 = memref.load %arg1[%c54] : memref<124xf32, #tpu.memory_space<smem>>
    %247 = vector.broadcast %246 : f32 to vector<16x128xf32>
    %248 = arith.mulf %13, %247 : vector<16x128xf32>
    %249 = arith.addf %245, %248 : vector<16x128xf32>
    %c55 = arith.constant 55 : index
    %250 = memref.load %arg1[%c55] : memref<124xf32, #tpu.memory_space<smem>>
    %251 = vector.broadcast %250 : f32 to vector<16x128xf32>
    %252 = arith.mulf %15, %251 : vector<16x128xf32>
    %253 = arith.addf %249, %252 : vector<16x128xf32>
    %c56 = arith.constant 56 : index
    %254 = memref.load %arg1[%c56] : memref<124xf32, #tpu.memory_space<smem>>
    %255 = vector.broadcast %254 : f32 to vector<16x128xf32>
    %256 = arith.mulf %1, %255 : vector<16x128xf32>
    %c71 = arith.constant 71 : index
    %257 = memref.load %arg1[%c71] : memref<124xf32, #tpu.memory_space<smem>>
    %258 = vector.broadcast %257 : f32 to vector<16x128xf32>
    %259 = arith.addf %256, %258 : vector<16x128xf32>
    %c57 = arith.constant 57 : index
    %260 = memref.load %arg1[%c57] : memref<124xf32, #tpu.memory_space<smem>>
    %261 = vector.broadcast %260 : f32 to vector<16x128xf32>
    %262 = arith.mulf %3, %261 : vector<16x128xf32>
    %263 = arith.addf %259, %262 : vector<16x128xf32>
    %c58 = arith.constant 58 : index
    %264 = memref.load %arg1[%c58] : memref<124xf32, #tpu.memory_space<smem>>
    %265 = vector.broadcast %264 : f32 to vector<16x128xf32>
    %266 = arith.mulf %5, %265 : vector<16x128xf32>
    %267 = arith.addf %263, %266 : vector<16x128xf32>
    %c59 = arith.constant 59 : index
    %268 = memref.load %arg1[%c59] : memref<124xf32, #tpu.memory_space<smem>>
    %269 = vector.broadcast %268 : f32 to vector<16x128xf32>
    %270 = arith.mulf %7, %269 : vector<16x128xf32>
    %271 = arith.addf %267, %270 : vector<16x128xf32>
    %c60 = arith.constant 60 : index
    %272 = memref.load %arg1[%c60] : memref<124xf32, #tpu.memory_space<smem>>
    %273 = vector.broadcast %272 : f32 to vector<16x128xf32>
    %274 = arith.mulf %9, %273 : vector<16x128xf32>
    %275 = arith.addf %271, %274 : vector<16x128xf32>
    %c61 = arith.constant 61 : index
    %276 = memref.load %arg1[%c61] : memref<124xf32, #tpu.memory_space<smem>>
    %277 = vector.broadcast %276 : f32 to vector<16x128xf32>
    %278 = arith.mulf %11, %277 : vector<16x128xf32>
    %279 = arith.addf %275, %278 : vector<16x128xf32>
    %c62 = arith.constant 62 : index
    %280 = memref.load %arg1[%c62] : memref<124xf32, #tpu.memory_space<smem>>
    %281 = vector.broadcast %280 : f32 to vector<16x128xf32>
    %282 = arith.mulf %13, %281 : vector<16x128xf32>
    %283 = arith.addf %279, %282 : vector<16x128xf32>
    %c63 = arith.constant 63 : index
    %284 = memref.load %arg1[%c63] : memref<124xf32, #tpu.memory_space<smem>>
    %285 = vector.broadcast %284 : f32 to vector<16x128xf32>
    %286 = arith.mulf %15, %285 : vector<16x128xf32>
    %287 = arith.addf %283, %286 : vector<16x128xf32>
    %cst = arith.constant 0.000000e+00 : f32
    %288 = vector.broadcast %cst : f32 to vector<16x128xf32>
    %289 = arith.subf %288, %49 : vector<16x128xf32>
    %290 = math.exp %289 : vector<16x128xf32>
    %cst_24 = arith.constant 1.000000e+00 : f32
    %291 = vector.broadcast %cst_24 : f32 to vector<16x128xf32>
    %292 = arith.addf %291, %290 : vector<16x128xf32>
    %293 = tpu.reciprocal %292 {approx = true} : vector<16x128xf32> -> vector<16x128xf32>
    %cst_25 = arith.constant 0.000000e+00 : f32
    %294 = vector.broadcast %cst_25 : f32 to vector<16x128xf32>
    %295 = arith.subf %294, %83 : vector<16x128xf32>
    %296 = math.exp %295 : vector<16x128xf32>
    %cst_26 = arith.constant 1.000000e+00 : f32
    %297 = vector.broadcast %cst_26 : f32 to vector<16x128xf32>
    %298 = arith.addf %297, %296 : vector<16x128xf32>
    %299 = tpu.reciprocal %298 {approx = true} : vector<16x128xf32> -> vector<16x128xf32>
    %cst_27 = arith.constant 0.000000e+00 : f32
    %300 = vector.broadcast %cst_27 : f32 to vector<16x128xf32>
    %301 = arith.subf %300, %117 : vector<16x128xf32>
    %302 = math.exp %301 : vector<16x128xf32>
    %cst_28 = arith.constant 1.000000e+00 : f32
    %303 = vector.broadcast %cst_28 : f32 to vector<16x128xf32>
    %304 = arith.addf %303, %302 : vector<16x128xf32>
    %305 = tpu.reciprocal %304 {approx = true} : vector<16x128xf32> -> vector<16x128xf32>
    %cst_29 = arith.constant 0.000000e+00 : f32
    %306 = vector.broadcast %cst_29 : f32 to vector<16x128xf32>
    %307 = arith.subf %306, %151 : vector<16x128xf32>
    %308 = math.exp %307 : vector<16x128xf32>
    %cst_30 = arith.constant 1.000000e+00 : f32
    %309 = vector.broadcast %cst_30 : f32 to vector<16x128xf32>
    %310 = arith.addf %309, %308 : vector<16x128xf32>
    %311 = tpu.reciprocal %310 {approx = true} : vector<16x128xf32> -> vector<16x128xf32>
    %cst_31 = arith.constant 0.000000e+00 : f32
    %312 = vector.broadcast %cst_31 : f32 to vector<16x128xf32>
    %313 = arith.subf %312, %185 : vector<16x128xf32>
    %314 = math.exp %313 : vector<16x128xf32>
    %cst_32 = arith.constant 1.000000e+00 : f32
    %315 = vector.broadcast %cst_32 : f32 to vector<16x128xf32>
    %316 = arith.addf %315, %314 : vector<16x128xf32>
    %317 = tpu.reciprocal %316 {approx = true} : vector<16x128xf32> -> vector<16x128xf32>
    %cst_33 = arith.constant 0.000000e+00 : f32
    %318 = vector.broadcast %cst_33 : f32 to vector<16x128xf32>
    %319 = arith.subf %318, %219 : vector<16x128xf32>
    %320 = math.exp %319 : vector<16x128xf32>
    %cst_34 = arith.constant 1.000000e+00 : f32
    %321 = vector.broadcast %cst_34 : f32 to vector<16x128xf32>
    %322 = arith.addf %321, %320 : vector<16x128xf32>
    %323 = tpu.reciprocal %322 {approx = true} : vector<16x128xf32> -> vector<16x128xf32>
    %cst_35 = arith.constant 0.000000e+00 : f32
    %324 = vector.broadcast %cst_35 : f32 to vector<16x128xf32>
    %325 = arith.subf %324, %253 : vector<16x128xf32>
    %326 = math.exp %325 : vector<16x128xf32>
    %cst_36 = arith.constant 1.000000e+00 : f32
    %327 = vector.broadcast %cst_36 : f32 to vector<16x128xf32>
    %328 = arith.addf %327, %326 : vector<16x128xf32>
    %329 = tpu.reciprocal %328 {approx = true} : vector<16x128xf32> -> vector<16x128xf32>
    %cst_37 = arith.constant 0.000000e+00 : f32
    %330 = vector.broadcast %cst_37 : f32 to vector<16x128xf32>
    %331 = arith.subf %330, %287 : vector<16x128xf32>
    %332 = math.exp %331 : vector<16x128xf32>
    %cst_38 = arith.constant 1.000000e+00 : f32
    %333 = vector.broadcast %cst_38 : f32 to vector<16x128xf32>
    %334 = arith.addf %333, %332 : vector<16x128xf32>
    %335 = tpu.reciprocal %334 {approx = true} : vector<16x128xf32> -> vector<16x128xf32>
    %c72 = arith.constant 72 : index
    %336 = memref.load %arg1[%c72] : memref<124xf32, #tpu.memory_space<smem>>
    %337 = vector.broadcast %336 : f32 to vector<16x128xf32>
    %338 = arith.mulf %293, %337 : vector<16x128xf32>
    %c104 = arith.constant 104 : index
    %339 = memref.load %arg1[%c104] : memref<124xf32, #tpu.memory_space<smem>>
    %340 = vector.broadcast %339 : f32 to vector<16x128xf32>
    %341 = arith.addf %338, %340 : vector<16x128xf32>
    %c73 = arith.constant 73 : index
    %342 = memref.load %arg1[%c73] : memref<124xf32, #tpu.memory_space<smem>>
    %343 = vector.broadcast %342 : f32 to vector<16x128xf32>
    %344 = arith.mulf %299, %343 : vector<16x128xf32>
    %345 = arith.addf %341, %344 : vector<16x128xf32>
    %c74 = arith.constant 74 : index
    %346 = memref.load %arg1[%c74] : memref<124xf32, #tpu.memory_space<smem>>
    %347 = vector.broadcast %346 : f32 to vector<16x128xf32>
    %348 = arith.mulf %305, %347 : vector<16x128xf32>
    %349 = arith.addf %345, %348 : vector<16x128xf32>
    %c75 = arith.constant 75 : index
    %350 = memref.load %arg1[%c75] : memref<124xf32, #tpu.memory_space<smem>>
    %351 = vector.broadcast %350 : f32 to vector<16x128xf32>
    %352 = arith.mulf %311, %351 : vector<16x128xf32>
    %353 = arith.addf %349, %352 : vector<16x128xf32>
    %c76 = arith.constant 76 : index
    %354 = memref.load %arg1[%c76] : memref<124xf32, #tpu.memory_space<smem>>
    %355 = vector.broadcast %354 : f32 to vector<16x128xf32>
    %356 = arith.mulf %317, %355 : vector<16x128xf32>
    %357 = arith.addf %353, %356 : vector<16x128xf32>
    %c77 = arith.constant 77 : index
    %358 = memref.load %arg1[%c77] : memref<124xf32, #tpu.memory_space<smem>>
    %359 = vector.broadcast %358 : f32 to vector<16x128xf32>
    %360 = arith.mulf %323, %359 : vector<16x128xf32>
    %361 = arith.addf %357, %360 : vector<16x128xf32>
    %c78 = arith.constant 78 : index
    %362 = memref.load %arg1[%c78] : memref<124xf32, #tpu.memory_space<smem>>
    %363 = vector.broadcast %362 : f32 to vector<16x128xf32>
    %364 = arith.mulf %329, %363 : vector<16x128xf32>
    %365 = arith.addf %361, %364 : vector<16x128xf32>
    %c79 = arith.constant 79 : index
    %366 = memref.load %arg1[%c79] : memref<124xf32, #tpu.memory_space<smem>>
    %367 = vector.broadcast %366 : f32 to vector<16x128xf32>
    %368 = arith.mulf %335, %367 : vector<16x128xf32>
    %369 = arith.addf %365, %368 : vector<16x128xf32>
    %c80 = arith.constant 80 : index
    %370 = memref.load %arg1[%c80] : memref<124xf32, #tpu.memory_space<smem>>
    %371 = vector.broadcast %370 : f32 to vector<16x128xf32>
    %372 = arith.mulf %293, %371 : vector<16x128xf32>
    %c105 = arith.constant 105 : index
    %373 = memref.load %arg1[%c105] : memref<124xf32, #tpu.memory_space<smem>>
    %374 = vector.broadcast %373 : f32 to vector<16x128xf32>
    %375 = arith.addf %372, %374 : vector<16x128xf32>
    %c81 = arith.constant 81 : index
    %376 = memref.load %arg1[%c81] : memref<124xf32, #tpu.memory_space<smem>>
    %377 = vector.broadcast %376 : f32 to vector<16x128xf32>
    %378 = arith.mulf %299, %377 : vector<16x128xf32>
    %379 = arith.addf %375, %378 : vector<16x128xf32>
    %c82 = arith.constant 82 : index
    %380 = memref.load %arg1[%c82] : memref<124xf32, #tpu.memory_space<smem>>
    %381 = vector.broadcast %380 : f32 to vector<16x128xf32>
    %382 = arith.mulf %305, %381 : vector<16x128xf32>
    %383 = arith.addf %379, %382 : vector<16x128xf32>
    %c83 = arith.constant 83 : index
    %384 = memref.load %arg1[%c83] : memref<124xf32, #tpu.memory_space<smem>>
    %385 = vector.broadcast %384 : f32 to vector<16x128xf32>
    %386 = arith.mulf %311, %385 : vector<16x128xf32>
    %387 = arith.addf %383, %386 : vector<16x128xf32>
    %c84 = arith.constant 84 : index
    %388 = memref.load %arg1[%c84] : memref<124xf32, #tpu.memory_space<smem>>
    %389 = vector.broadcast %388 : f32 to vector<16x128xf32>
    %390 = arith.mulf %317, %389 : vector<16x128xf32>
    %391 = arith.addf %387, %390 : vector<16x128xf32>
    %c85 = arith.constant 85 : index
    %392 = memref.load %arg1[%c85] : memref<124xf32, #tpu.memory_space<smem>>
    %393 = vector.broadcast %392 : f32 to vector<16x128xf32>
    %394 = arith.mulf %323, %393 : vector<16x128xf32>
    %395 = arith.addf %391, %394 : vector<16x128xf32>
    %c86 = arith.constant 86 : index
    %396 = memref.load %arg1[%c86] : memref<124xf32, #tpu.memory_space<smem>>
    %397 = vector.broadcast %396 : f32 to vector<16x128xf32>
    %398 = arith.mulf %329, %397 : vector<16x128xf32>
    %399 = arith.addf %395, %398 : vector<16x128xf32>
    %c87 = arith.constant 87 : index
    %400 = memref.load %arg1[%c87] : memref<124xf32, #tpu.memory_space<smem>>
    %401 = vector.broadcast %400 : f32 to vector<16x128xf32>
    %402 = arith.mulf %335, %401 : vector<16x128xf32>
    %403 = arith.addf %399, %402 : vector<16x128xf32>
    %c88 = arith.constant 88 : index
    %404 = memref.load %arg1[%c88] : memref<124xf32, #tpu.memory_space<smem>>
    %405 = vector.broadcast %404 : f32 to vector<16x128xf32>
    %406 = arith.mulf %293, %405 : vector<16x128xf32>
    %c106 = arith.constant 106 : index
    %407 = memref.load %arg1[%c106] : memref<124xf32, #tpu.memory_space<smem>>
    %408 = vector.broadcast %407 : f32 to vector<16x128xf32>
    %409 = arith.addf %406, %408 : vector<16x128xf32>
    %c89 = arith.constant 89 : index
    %410 = memref.load %arg1[%c89] : memref<124xf32, #tpu.memory_space<smem>>
    %411 = vector.broadcast %410 : f32 to vector<16x128xf32>
    %412 = arith.mulf %299, %411 : vector<16x128xf32>
    %413 = arith.addf %409, %412 : vector<16x128xf32>
    %c90 = arith.constant 90 : index
    %414 = memref.load %arg1[%c90] : memref<124xf32, #tpu.memory_space<smem>>
    %415 = vector.broadcast %414 : f32 to vector<16x128xf32>
    %416 = arith.mulf %305, %415 : vector<16x128xf32>
    %417 = arith.addf %413, %416 : vector<16x128xf32>
    %c91 = arith.constant 91 : index
    %418 = memref.load %arg1[%c91] : memref<124xf32, #tpu.memory_space<smem>>
    %419 = vector.broadcast %418 : f32 to vector<16x128xf32>
    %420 = arith.mulf %311, %419 : vector<16x128xf32>
    %421 = arith.addf %417, %420 : vector<16x128xf32>
    %c92 = arith.constant 92 : index
    %422 = memref.load %arg1[%c92] : memref<124xf32, #tpu.memory_space<smem>>
    %423 = vector.broadcast %422 : f32 to vector<16x128xf32>
    %424 = arith.mulf %317, %423 : vector<16x128xf32>
    %425 = arith.addf %421, %424 : vector<16x128xf32>
    %c93 = arith.constant 93 : index
    %426 = memref.load %arg1[%c93] : memref<124xf32, #tpu.memory_space<smem>>
    %427 = vector.broadcast %426 : f32 to vector<16x128xf32>
    %428 = arith.mulf %323, %427 : vector<16x128xf32>
    %429 = arith.addf %425, %428 : vector<16x128xf32>
    %c94 = arith.constant 94 : index
    %430 = memref.load %arg1[%c94] : memref<124xf32, #tpu.memory_space<smem>>
    %431 = vector.broadcast %430 : f32 to vector<16x128xf32>
    %432 = arith.mulf %329, %431 : vector<16x128xf32>
    %433 = arith.addf %429, %432 : vector<16x128xf32>
    %c95 = arith.constant 95 : index
    %434 = memref.load %arg1[%c95] : memref<124xf32, #tpu.memory_space<smem>>
    %435 = vector.broadcast %434 : f32 to vector<16x128xf32>
    %436 = arith.mulf %335, %435 : vector<16x128xf32>
    %437 = arith.addf %433, %436 : vector<16x128xf32>
    %c96 = arith.constant 96 : index
    %438 = memref.load %arg1[%c96] : memref<124xf32, #tpu.memory_space<smem>>
    %439 = vector.broadcast %438 : f32 to vector<16x128xf32>
    %440 = arith.mulf %293, %439 : vector<16x128xf32>
    %c107 = arith.constant 107 : index
    %441 = memref.load %arg1[%c107] : memref<124xf32, #tpu.memory_space<smem>>
    %442 = vector.broadcast %441 : f32 to vector<16x128xf32>
    %443 = arith.addf %440, %442 : vector<16x128xf32>
    %c97 = arith.constant 97 : index
    %444 = memref.load %arg1[%c97] : memref<124xf32, #tpu.memory_space<smem>>
    %445 = vector.broadcast %444 : f32 to vector<16x128xf32>
    %446 = arith.mulf %299, %445 : vector<16x128xf32>
    %447 = arith.addf %443, %446 : vector<16x128xf32>
    %c98 = arith.constant 98 : index
    %448 = memref.load %arg1[%c98] : memref<124xf32, #tpu.memory_space<smem>>
    %449 = vector.broadcast %448 : f32 to vector<16x128xf32>
    %450 = arith.mulf %305, %449 : vector<16x128xf32>
    %451 = arith.addf %447, %450 : vector<16x128xf32>
    %c99 = arith.constant 99 : index
    %452 = memref.load %arg1[%c99] : memref<124xf32, #tpu.memory_space<smem>>
    %453 = vector.broadcast %452 : f32 to vector<16x128xf32>
    %454 = arith.mulf %311, %453 : vector<16x128xf32>
    %455 = arith.addf %451, %454 : vector<16x128xf32>
    %c100 = arith.constant 100 : index
    %456 = memref.load %arg1[%c100] : memref<124xf32, #tpu.memory_space<smem>>
    %457 = vector.broadcast %456 : f32 to vector<16x128xf32>
    %458 = arith.mulf %317, %457 : vector<16x128xf32>
    %459 = arith.addf %455, %458 : vector<16x128xf32>
    %c101 = arith.constant 101 : index
    %460 = memref.load %arg1[%c101] : memref<124xf32, #tpu.memory_space<smem>>
    %461 = vector.broadcast %460 : f32 to vector<16x128xf32>
    %462 = arith.mulf %323, %461 : vector<16x128xf32>
    %463 = arith.addf %459, %462 : vector<16x128xf32>
    %c102 = arith.constant 102 : index
    %464 = memref.load %arg1[%c102] : memref<124xf32, #tpu.memory_space<smem>>
    %465 = vector.broadcast %464 : f32 to vector<16x128xf32>
    %466 = arith.mulf %329, %465 : vector<16x128xf32>
    %467 = arith.addf %463, %466 : vector<16x128xf32>
    %c103 = arith.constant 103 : index
    %468 = memref.load %arg1[%c103] : memref<124xf32, #tpu.memory_space<smem>>
    %469 = vector.broadcast %468 : f32 to vector<16x128xf32>
    %470 = arith.mulf %335, %469 : vector<16x128xf32>
    %471 = arith.addf %467, %470 : vector<16x128xf32>
    %cst_39 = arith.constant 0.000000e+00 : f32
    %472 = vector.broadcast %cst_39 : f32 to vector<16x128xf32>
    %473 = arith.subf %472, %369 : vector<16x128xf32>
    %474 = math.exp %473 : vector<16x128xf32>
    %cst_40 = arith.constant 1.000000e+00 : f32
    %475 = vector.broadcast %cst_40 : f32 to vector<16x128xf32>
    %476 = arith.addf %475, %474 : vector<16x128xf32>
    %477 = tpu.reciprocal %476 {approx = true} : vector<16x128xf32> -> vector<16x128xf32>
    %cst_41 = arith.constant 0.000000e+00 : f32
    %478 = vector.broadcast %cst_41 : f32 to vector<16x128xf32>
    %479 = arith.subf %478, %403 : vector<16x128xf32>
    %480 = math.exp %479 : vector<16x128xf32>
    %cst_42 = arith.constant 1.000000e+00 : f32
    %481 = vector.broadcast %cst_42 : f32 to vector<16x128xf32>
    %482 = arith.addf %481, %480 : vector<16x128xf32>
    %483 = tpu.reciprocal %482 {approx = true} : vector<16x128xf32> -> vector<16x128xf32>
    %cst_43 = arith.constant 0.000000e+00 : f32
    %484 = vector.broadcast %cst_43 : f32 to vector<16x128xf32>
    %485 = arith.subf %484, %437 : vector<16x128xf32>
    %486 = math.exp %485 : vector<16x128xf32>
    %cst_44 = arith.constant 1.000000e+00 : f32
    %487 = vector.broadcast %cst_44 : f32 to vector<16x128xf32>
    %488 = arith.addf %487, %486 : vector<16x128xf32>
    %489 = tpu.reciprocal %488 {approx = true} : vector<16x128xf32> -> vector<16x128xf32>
    %cst_45 = arith.constant 0.000000e+00 : f32
    %490 = vector.broadcast %cst_45 : f32 to vector<16x128xf32>
    %491 = arith.subf %490, %471 : vector<16x128xf32>
    %492 = math.exp %491 : vector<16x128xf32>
    %cst_46 = arith.constant 1.000000e+00 : f32
    %493 = vector.broadcast %cst_46 : f32 to vector<16x128xf32>
    %494 = arith.addf %493, %492 : vector<16x128xf32>
    %495 = tpu.reciprocal %494 {approx = true} : vector<16x128xf32> -> vector<16x128xf32>
    %c108 = arith.constant 108 : index
    %496 = memref.load %arg1[%c108] : memref<124xf32, #tpu.memory_space<smem>>
    %497 = vector.broadcast %496 : f32 to vector<16x128xf32>
    %498 = arith.mulf %477, %497 : vector<16x128xf32>
    %c116 = arith.constant 116 : index
    %499 = memref.load %arg1[%c116] : memref<124xf32, #tpu.memory_space<smem>>
    %500 = vector.broadcast %499 : f32 to vector<16x128xf32>
    %501 = arith.addf %498, %500 : vector<16x128xf32>
    %c109 = arith.constant 109 : index
    %502 = memref.load %arg1[%c109] : memref<124xf32, #tpu.memory_space<smem>>
    %503 = vector.broadcast %502 : f32 to vector<16x128xf32>
    %504 = arith.mulf %483, %503 : vector<16x128xf32>
    %505 = arith.addf %501, %504 : vector<16x128xf32>
    %c110 = arith.constant 110 : index
    %506 = memref.load %arg1[%c110] : memref<124xf32, #tpu.memory_space<smem>>
    %507 = vector.broadcast %506 : f32 to vector<16x128xf32>
    %508 = arith.mulf %489, %507 : vector<16x128xf32>
    %509 = arith.addf %505, %508 : vector<16x128xf32>
    %c111 = arith.constant 111 : index
    %510 = memref.load %arg1[%c111] : memref<124xf32, #tpu.memory_space<smem>>
    %511 = vector.broadcast %510 : f32 to vector<16x128xf32>
    %512 = arith.mulf %495, %511 : vector<16x128xf32>
    %513 = arith.addf %509, %512 : vector<16x128xf32>
    %c112 = arith.constant 112 : index
    %514 = memref.load %arg1[%c112] : memref<124xf32, #tpu.memory_space<smem>>
    %515 = vector.broadcast %514 : f32 to vector<16x128xf32>
    %516 = arith.mulf %477, %515 : vector<16x128xf32>
    %c117 = arith.constant 117 : index
    %517 = memref.load %arg1[%c117] : memref<124xf32, #tpu.memory_space<smem>>
    %518 = vector.broadcast %517 : f32 to vector<16x128xf32>
    %519 = arith.addf %516, %518 : vector<16x128xf32>
    %c113 = arith.constant 113 : index
    %520 = memref.load %arg1[%c113] : memref<124xf32, #tpu.memory_space<smem>>
    %521 = vector.broadcast %520 : f32 to vector<16x128xf32>
    %522 = arith.mulf %483, %521 : vector<16x128xf32>
    %523 = arith.addf %519, %522 : vector<16x128xf32>
    %c114 = arith.constant 114 : index
    %524 = memref.load %arg1[%c114] : memref<124xf32, #tpu.memory_space<smem>>
    %525 = vector.broadcast %524 : f32 to vector<16x128xf32>
    %526 = arith.mulf %489, %525 : vector<16x128xf32>
    %527 = arith.addf %523, %526 : vector<16x128xf32>
    %c115 = arith.constant 115 : index
    %528 = memref.load %arg1[%c115] : memref<124xf32, #tpu.memory_space<smem>>
    %529 = vector.broadcast %528 : f32 to vector<16x128xf32>
    %530 = arith.mulf %495, %529 : vector<16x128xf32>
    %531 = arith.addf %527, %530 : vector<16x128xf32>
    %cst_47 = arith.constant 0.000000e+00 : f32
    %532 = vector.broadcast %cst_47 : f32 to vector<16x128xf32>
    %533 = arith.subf %532, %513 : vector<16x128xf32>
    %534 = math.exp %533 : vector<16x128xf32>
    %cst_48 = arith.constant 1.000000e+00 : f32
    %535 = vector.broadcast %cst_48 : f32 to vector<16x128xf32>
    %536 = arith.addf %535, %534 : vector<16x128xf32>
    %537 = tpu.reciprocal %536 {approx = true} : vector<16x128xf32> -> vector<16x128xf32>
    %cst_49 = arith.constant 0.000000e+00 : f32
    %538 = vector.broadcast %cst_49 : f32 to vector<16x128xf32>
    %539 = arith.subf %538, %531 : vector<16x128xf32>
    %540 = math.exp %539 : vector<16x128xf32>
    %cst_50 = arith.constant 1.000000e+00 : f32
    %541 = vector.broadcast %cst_50 : f32 to vector<16x128xf32>
    %542 = arith.addf %541, %540 : vector<16x128xf32>
    %543 = tpu.reciprocal %542 {approx = true} : vector<16x128xf32> -> vector<16x128xf32>
    %c118 = arith.constant 118 : index
    %544 = memref.load %arg1[%c118] : memref<124xf32, #tpu.memory_space<smem>>
    %545 = vector.broadcast %544 : f32 to vector<16x128xf32>
    %546 = arith.mulf %537, %545 : vector<16x128xf32>
    %c122 = arith.constant 122 : index
    %547 = memref.load %arg1[%c122] : memref<124xf32, #tpu.memory_space<smem>>
    %548 = vector.broadcast %547 : f32 to vector<16x128xf32>
    %549 = arith.addf %546, %548 : vector<16x128xf32>
    %c119 = arith.constant 119 : index
    %550 = memref.load %arg1[%c119] : memref<124xf32, #tpu.memory_space<smem>>
    %551 = vector.broadcast %550 : f32 to vector<16x128xf32>
    %552 = arith.mulf %543, %551 : vector<16x128xf32>
    %553 = arith.addf %549, %552 : vector<16x128xf32>
    %c120 = arith.constant 120 : index
    %554 = memref.load %arg1[%c120] : memref<124xf32, #tpu.memory_space<smem>>
    %555 = vector.broadcast %554 : f32 to vector<16x128xf32>
    %556 = arith.mulf %537, %555 : vector<16x128xf32>
    %c123 = arith.constant 123 : index
    %557 = memref.load %arg1[%c123] : memref<124xf32, #tpu.memory_space<smem>>
    %558 = vector.broadcast %557 : f32 to vector<16x128xf32>
    %559 = arith.addf %556, %558 : vector<16x128xf32>
    %c121 = arith.constant 121 : index
    %560 = memref.load %arg1[%c121] : memref<124xf32, #tpu.memory_space<smem>>
    %561 = vector.broadcast %560 : f32 to vector<16x128xf32>
    %562 = arith.mulf %543, %561 : vector<16x128xf32>
    %563 = arith.addf %559, %562 : vector<16x128xf32>
    %c0_51 = arith.constant 0 : index
    %c0_52 = arith.constant 0 : index
    %c0_53 = arith.constant 0 : index
    %564 = vector.load %arg3[%c0_51, %c0_52, %c0_53] : memref<2x16x128xf32, #tpu.memory_space<vmem>>, vector<1x16x128xf32>
    %565 = vector.shape_cast %564 : vector<1x16x128xf32> to vector<16x128xf32>
    %566 = vector.shape_cast %553 : vector<16x128xf32> to vector<1x16x128xf32>
    tpu.vector_store %arg3[%c0_51, %c0_52, %c0_53], %566 {strides = array<i32>} : memref<2x16x128xf32, #tpu.memory_space<vmem>>, vector<1x16x128xf32>,
    %c1_54 = arith.constant 1 : index
    %c0_55 = arith.constant 0 : index
    %c0_56 = arith.constant 0 : index
    %567 = vector.load %arg3[%c1_54, %c0_55, %c0_56] : memref<2x16x128xf32, #tpu.memory_space<vmem>>, vector<1x16x128xf32>
    %568 = vector.shape_cast %567 : vector<1x16x128xf32> to vector<16x128xf32>
    %569 = vector.shape_cast %563 : vector<16x128xf32> to vector<1x16x128xf32>
    tpu.vector_store %arg3[%c1_54, %c0_55, %c0_56], %569 {strides = array<i32>} : memref<2x16x128xf32, #tpu.memory_space<vmem>>, vector<1x16x128xf32>,
    return
  }
  func.func @transform_0(%arg0: i32) -> i32 {
    %c0_i32 = arith.constant 0 : i32
    %c0_i32_0 = arith.constant 0 : i32
    return %c0_i32 : i32
  }
  func.func @transform_1(%arg0: i32) -> (i32, i32, i32) {
    %c0_i32 = arith.constant 0 : i32
    %c0_i32_0 = arith.constant 0 : i32
    %c0_i32_1 = arith.constant 0 : i32
    return %c0_i32, %arg0, %c0_i32_0 : i32, i32, i32
  }
  func.func @transform_2(%arg0: i32) -> (i32, i32, i32) {
    %c0_i32 = arith.constant 0 : i32
    %c0_i32_0 = arith.constant 0 : i32
    %c0_i32_1 = arith.constant 0 : i32
    return %c0_i32, %arg0, %c0_i32_0 : i32, i32, i32
  }
}

</mosaic_0001>

<llo_original>
// kernel: mlp_forward.1
$region0: #{mlp_forward.1}
  #allocation0 [shape = 'u32[]', space=smem, size = 0x4, offset = 0x4, fixed_abs, tag = 'smem constant byte address 0x4 - core index']
  #allocation1 [shape = 'u32[72,128]{1,0:T(1,128)}', space=vmem, size = 0x9000, scoped, tag = 'internal scratch']
  %s0 = inlined_call_operand.vmem [shape: f32[124], index: 0, kind: input, shape index: {}]
  %s1 = inlined_call_operand.vmem [shape: f32[8,32,128], index: 1, kind: input, shape index: {}]
  %s2 = inlined_call_operand.vmem [shape: f32[2,32,128], index: 2, kind: output, shape index: {}]
  %s3 = sld [smem:[#allocation0]]
  $region117: #{mlp_forward.1} parent=0
    _
  %s5 = ssub.s32 1, %s3
  %s6 = scalar_select 0, %s5, %s3
  $region1: #{mlp_forward.1} parent=0
    #allocation2 [shape = 'u8[512]{0}', space=smem, size = 0x200, scoped, tag = 'input window, operand 0, single buffered']
    #allocation3 [shape = 's32[2]{0}', space=sflag, size = 0x8, scoped, tag = 'scoped memory for mlp_forward.1']
    #allocation4 [shape = 'u8[131072]{0}', space=vmem, size = 0x20000, scoped, tag = 'input window, operand 1']
    #allocation5 [shape = 'u8[32768]{0}', space=vmem, size = 0x8000, scoped, tag = 'output window, operand 0']
    %7 = vsyncpa [#allocation3], 0
    loop: start=0, step=1, limit=4
    $region2: #{mlp_forward.1} parent=1 // loop_pre_header
      _
    $region3: #{mlp_forward.1} parent=1 // loop_header
      %s9 = sphi 0, %s13
      %p10 = scmp.ge.s32.totalorder %s9, 4
      %s17 = sphi 0, %s17
      %s19 = sphi 0, %s17
      %s20 = sphi 0, %s19
      %s34 = sphi 0, %s20
      %s40 = sphi 0, %s42
      %s43 = sphi 0, %s40
      %s44 = sphi 0, %s43
      %s60 = sphi 0, %s44
      %s66 = sphi 0, %s68
      %s69 = sphi 0, %s66
      %s70 = sphi 0, %s69
      %s86 = sphi 0, %s70
    $region4: #{mlp_forward.1} parent=1 // loop_header_branch
      %12 = sbr.rel (%p10) target = $region8
    $region5: #{mlp_forward.1} parent=1 // loop_body
      %s14 = ssub.s32 %s9, 1
      %s15 = ssub.s32 %s9, 2
      %s16 = sadd.s32 %s9, 1
      %s18 = sadd.s32 %s17, 1
      %p21 = scmp.eq.s32.totalorder %s9, 1
      %p22 = scmp.ne.s32.totalorder %s17, %s19
      %p23 = scmp.eq.s32.totalorder %s9, 0
      %p24 = por %p22, %p23
      %p25 = scmp.ne.s32.totalorder %s17, %s19
      %p26 = scmp.eq.s32.totalorder %s14, 1
      %p27 = por %p25, %p26
      %p28 = scmp.ne.s32.totalorder %s19, %s20
      %p29 = scmp.eq.s32.totalorder %s14, 0
      %p30 = por %p28, %p29
      %p31 = scmp.ne.s32.totalorder %s19, %s20
      %p32 = scmp.eq.s32.totalorder %s15, 1
      %p33 = por %p31, %p32
      %p35 = scmp.ne.s32.totalorder %s20, %s34
      %p36 = scmp.eq.s32.totalorder %s15, 0
      %p37 = por %p35, %p36
      %s38 = ssub.s32 %s9, %s16
      %p39 = scmp.eq.s32.totalorder %s38, 0
      %s41 = sadd.s32 %s40, 1
      %s42 = scalar_select %p39, %s40, %s41
      %p45 = pneg %p39
      %p46 = scmp.eq.s32.totalorder %s9, 1
      %p47 = por %p45, %p46
      %p48 = scmp.ne.s32.totalorder %s40, %s43
      %p49 = scmp.eq.s32.totalorder %s9, 0
      %p50 = por %p48, %p49
      %p51 = scmp.ne.s32.totalorder %s40, %s43
      %p52 = scmp.eq.s32.totalorder %s14, 1
      %p53 = por %p51, %p52
      %p54 = scmp.ne.s32.totalorder %s43, %s44
      %p55 = scmp.eq.s32.totalorder %s14, 0
      %p56 = por %p54, %p55
      %p57 = scmp.ne.s32.totalorder %s43, %s44
      %p58 = scmp.eq.s32.totalorder %s15, 1
      %p59 = por %p57, %p58
      %p61 = scmp.ne.s32.totalorder %s44, %s60
      %p62 = scmp.eq.s32.totalorder %s15, 0
      %p63 = por %p61, %p62
      %s64 = ssub.s32 %s9, %s16
      %p65 = scmp.eq.s32.totalorder %s64, 0
      %s67 = sadd.s32 %s66, 1
      %s68 = scalar_select %p65, %s66, %s67
      %p71 = pneg %p65
      %p72 = scmp.eq.s32.totalorder %s9, 1
      %p73 = por %p71, %p72
      %p74 = scmp.ne.s32.totalorder %s66, %s69
      %p75 = scmp.eq.s32.totalorder %s9, 0
      %p76 = por %p74, %p75
      %p77 = scmp.ne.s32.totalorder %s66, %s69
      %p78 = scmp.eq.s32.totalorder %s14, 1
      %p79 = por %p77, %p78
      %p80 = scmp.ne.s32.totalorder %s69, %s70
      %p81 = scmp.eq.s32.totalorder %s14, 0
      %p82 = por %p80, %p81
      %p83 = scmp.ne.s32.totalorder %s69, %s70
      %p84 = scmp.eq.s32.totalorder %s15, 1
      %p85 = por %p83, %p84
      %p87 = scmp.ne.s32.totalorder %s70, %s86
      %p88 = scmp.eq.s32.totalorder %s15, 0
      %p89 = por %p87, %p88
      %p90 = scmp.le.s32.totalorder 1, %s9
      %p91 = scmp.lt.s32.totalorder %s9, 3
      %p92 = pnand %p90, %p91
      %p93 = pneg %p92
      // Predicated region
      $region9: #{mlp_forward.1} parent=5 // pred_check
        _
      $region10: #{mlp_forward.1} parent=5 // pred_check_branch
        %95 = sbr.rel (%p92) target = $region12
      $region11: #{mlp_forward.1} parent=5 // pred_region
        %s96 = ssub.s32 %s9, 1
        // Predicated region
        $region13: #{mlp_forward.1} parent=11 // pred_check
          %p97 = pneg %p30
        $region14: #{mlp_forward.1} parent=11 // pred_check_branch
          %99 = sbr.rel (%p97) target = $region16
        $region15: #{mlp_forward.1} parent=11 // pred_region
          %101 = vsyncadd [#allocation3], 0
          %s103 = sshll.u32 %s0, 4
          %s104 = int_to_ptr.vmem [resolvable:$true] %s103
          %106 = dma.vmem_to_smem %s104, 16, [#allocation2], [#allocation3]
        $region16: #{mlp_forward.1} parent=11 // pred_fallthru
          _
      $region12: #{mlp_forward.1} parent=5 // pred_fallthru
        _
      %p107 = scmp.lt.s32.totalorder %s9, 2
      // Predicated region
      $region17: #{mlp_forward.1} parent=5 // pred_check
        %p108 = pneg %p107
      $region18: #{mlp_forward.1} parent=5 // pred_check_branch
        %110 = sbr.rel (%p108) target = $region20
      $region19: #{mlp_forward.1} parent=5 // pred_region
        // Predicated region
        $region21: #{mlp_forward.1} parent=19 // pred_check
          %p111 = pneg %p50
        $region22: #{mlp_forward.1} parent=19 // pred_check_branch
          %113 = sbr.rel (%p111) target = $region24
        $region23: #{mlp_forward.1} parent=19 // pred_region
          %s114 = sand.u32 %s40, 1
          %s115 = sand.u32 %s40, 1
          %s116 = smul.addr %s115, 128
          %s117 = scalar_lea.vmem [#allocation4], %s116
          %s118 = smul.u32 2, %s9
          %s119 = smul.addr %s118, 8
          %s120 = scalar_lea.vmem %s1, %s119
          // Predicated region
          $region25: #{mlp_forward.1} parent=23 // pred_check
            _
          $region26: #{mlp_forward.1} parent=23 // pred_check_branch
            %122 = sbr.rel (0) target = $region28
          $region27: #{mlp_forward.1} parent=23 // pred_region
            // Predicated region
            $region29: #{mlp_forward.1} parent=27 // pred_check
              _
            $region30: #{mlp_forward.1} parent=27 // pred_check_branch
              %124 = sbr.rel (0) target = $region32
            $region31: #{mlp_forward.1} parent=27 // pred_region
              // Predicated region
              $region44: #{mlp_forward.1} parent=31 // pred_check
                _
              $region45: #{mlp_forward.1} parent=31 // pred_check_branch
                %170 = sbr.rel (0) target = $region47
              $region46: #{mlp_forward.1} parent=31 // pred_region
                loop: start=0, step=1, limit=1
                $region48: #{mlp_forward.1} parent=46 // loop_pre_header
                  _
                $region49: #{mlp_forward.1} parent=46 // loop_header
                  %s172 = sphi 0, %s176
                  %p173 = scmp.ge.s32.totalorder %s172, 1
                  %s177 = sphi %s120, %s120
                  %s178 = sphi %s117, %s117
                $region50: #{mlp_forward.1} parent=46 // loop_header_branch
                  %175 = sbr.rel (%p173) target = $region54
                $region51: #{mlp_forward.1} parent=46 // loop_body
                  %v179 = vld [vmem:[%s177] sm:$0xff]
                  %180 = vst [vmem:[%s178] sm:$0xff] %v179
                  %v181 = vld [vmem:[%s177 + $0x8] sm:$0xff]
                  %182 = vst [vmem:[%s178 + $0x8] sm:$0xff] %v181
                  %v183 = vld [vmem:[%s177 + $0x20] sm:$0xff]
                  %184 = vst [vmem:[%s178 + $0x10] sm:$0xff] %v183
                  %v185 = vld [vmem:[%s177 + $0x28] sm:$0xff]
                  %186 = vst [vmem:[%s178 + $0x18] sm:$0xff] %v185
                  %v187 = vld [vmem:[%s177 + $0x40] sm:$0xff]
                  %188 = vst [vmem:[%s178 + $0x20] sm:$0xff] %v187
                  %v189 = vld [vmem:[%s177 + $0x48] sm:$0xff]
                  %190 = vst [vmem:[%s178 + $0x28] sm:$0xff] %v189
                  %v191 = vld [vmem:[%s177 + $0x60] sm:$0xff]
                  %192 = vst [vmem:[%s178 + $0x30] sm:$0xff] %v191
                  %v193 = vld [vmem:[%s177 + $0x68] sm:$0xff]
                  %194 = vst [vmem:[%s178 + $0x38] sm:$0xff] %v193
                  %v195 = vld [vmem:[%s177 + $0x80] sm:$0xff]
                  %196 = vst [vmem:[%s178 + $0x40] sm:$0xff] %v195
                  %v197 = vld [vmem:[%s177 + $0x88] sm:$0xff]
                  %198 = vst [vmem:[%s178 + $0x48] sm:$0xff] %v197
                  %v199 = vld [vmem:[%s177 + $0xa0] sm:$0xff]
                  %200 = vst [vmem:[%s178 + $0x50] sm:$0xff] %v199
                  %v201 = vld [vmem:[%s177 + $0xa8] sm:$0xff]
                  %202 = vst [vmem:[%s178 + $0x58] sm:$0xff] %v201
                  %v203 = vld [vmem:[%s177 + $0xc0] sm:$0xff]
                  %204 = vst [vmem:[%s178 + $0x60] sm:$0xff] %v203
                  %v205 = vld [vmem:[%s177 + $0xc8] sm:$0xff]
                  %206 = vst [vmem:[%s178 + $0x68] sm:$0xff] %v205
                  %v207 = vld [vmem:[%s177 + $0xe0] sm:$0xff]
                  %208 = vst [vmem:[%s178 + $0x70] sm:$0xff] %v207
                  %v209 = vld [vmem:[%s177 + $0xe8] sm:$0xff]
                  %210 = vst [vmem:[%s178 + $0x78] sm:$0xff] %v209
                $region52: #{mlp_forward.1} parent=46 // loop_footer
                  %s176 = sadd.s32 1, %s172
                $region53: #{mlp_forward.1} parent=46 // loop_footer_branch
                  %171 = sbr.rel target = $region49
                $region54: #{mlp_forward.1} parent=46 // loop_exit
                  _
              $region47: #{mlp_forward.1} parent=31 // pred_fallthru
                _
              // Predicated region
              $region55: #{mlp_forward.1} parent=31 // pred_check
                _
              $region56: #{mlp_forward.1} parent=31 // pred_check_branch
                %212 = sbr.rel target = $region58
              $region57: #{mlp_forward.1} parent=31 // pred_region
                _
              $region58: #{mlp_forward.1} parent=31 // pred_fallthru
                _
            $region32: #{mlp_forward.1} parent=27 // pred_fallthru
              _
            // Predicated region
            $region33: #{mlp_forward.1} parent=27 // pred_check
              _
            $region34: #{mlp_forward.1} parent=27 // pred_check_branch
              %126 = sbr.rel target = $region36
            $region35: #{mlp_forward.1} parent=27 // pred_region
              %s128 = ssub.s32 256, 1
              loop: start=0, step=1, limit=1
              $region37: #{mlp_forward.1} parent=35 // loop_pre_header
                _
              $region38: #{mlp_forward.1} parent=35 // loop_header
                %s130 = sphi 0, %s134
                %p131 = scmp.ge.s32.totalorder %s130, 1
                %s135 = sphi %s120, %s120
                %s136 = sphi %s117, %s117
              $region39: #{mlp_forward.1} parent=35 // loop_header_branch
                %133 = sbr.rel (%p131) target = $region43
              $region40: #{mlp_forward.1} parent=35 // loop_body
                %v137 = vld [vmem:[%s135] sm:%s128]
                %138 = vst [vmem:[%s136] sm:%s128] %v137
                %v139 = vld [vmem:[%s135 + $0x8] sm:%s128]
                %140 = vst [vmem:[%s136 + $0x8] sm:%s128] %v139
                %v141 = vld [vmem:[%s135 + $0x20] sm:%s128]
                %142 = vst [vmem:[%s136 + $0x10] sm:%s128] %v141
                %v143 = vld [vmem:[%s135 + $0x28] sm:%s128]
                %144 = vst [vmem:[%s136 + $0x18] sm:%s128] %v143
                %v145 = vld [vmem:[%s135 + $0x40] sm:%s128]
                %146 = vst [vmem:[%s136 + $0x20] sm:%s128] %v145
                %v147 = vld [vmem:[%s135 + $0x48] sm:%s128]
                %148 = vst [vmem:[%s136 + $0x28] sm:%s128] %v147
                %v149 = vld [vmem:[%s135 + $0x60] sm:%s128]
                %150 = vst [vmem:[%s136 + $0x30] sm:%s128] %v149
                %v151 = vld [vmem:[%s135 + $0x68] sm:%s128]
                %152 = vst [vmem:[%s136 + $0x38] sm:%s128] %v151
                %v153 = vld [vmem:[%s135 + $0x80] sm:%s128]
                %154 = vst [vmem:[%s136 + $0x40] sm:%s128] %v153
                %v155 = vld [vmem:[%s135 + $0x88] sm:%s128]
                %156 = vst [vmem:[%s136 + $0x48] sm:%s128] %v155
                %v157 = vld [vmem:[%s135 + $0xa0] sm:%s128]
                %158 = vst [vmem:[%s136 + $0x50] sm:%s128] %v157
                %v159 = vld [vmem:[%s135 + $0xa8] sm:%s128]
                %160 = vst [vmem:[%s136 + $0x58] sm:%s128] %v159
                %v161 = vld [vmem:[%s135 + $0xc0] sm:%s128]
                %162 = vst [vmem:[%s136 + $0x60] sm:%s128] %v161
                %v163 = vld [vmem:[%s135 + $0xc8] sm:%s128]
                %164 = vst [vmem:[%s136 + $0x68] sm:%s128] %v163
                %v165 = vld [vmem:[%s135 + $0xe0] sm:%s128]
                %166 = vst [vmem:[%s136 + $0x70] sm:%s128] %v165
                %v167 = vld [vmem:[%s135 + $0xe8] sm:%s128]
                %168 = vst [vmem:[%s136 + $0x78] sm:%s128] %v167
              $region41: #{mlp_forward.1} parent=35 // loop_footer
                %s134 = sadd.s32 1, %s130
              $region42: #{mlp_forward.1} parent=35 // loop_footer_branch
                %129 = sbr.rel target = $region38
              $region43: #{mlp_forward.1} parent=35 // loop_exit
                _
            $region36: #{mlp_forward.1} parent=27 // pred_fallthru
              _
          $region28: #{mlp_forward.1} parent=23 // pred_fallthru
            _
          %213 = vnop
        $region24: #{mlp_forward.1} parent=19 // pred_fallthru
          _
      $region20: #{mlp_forward.1} parent=5 // pred_fallthru
        _
      %p214 = scmp.le.s32.totalorder 1, %s9
      %p215 = scmp.lt.s32.totalorder %s9, 3
      %p216 = pnand %p214, %p215
      %p217 = pneg %p216
      // Predicated region
      $region59: #{mlp_forward.1} parent=5 // pred_check
        _
      $region60: #{mlp_forward.1} parent=5 // pred_check_branch
        %219 = sbr.rel (%p216) target = $region62
      $region61: #{mlp_forward.1} parent=5 // pred_region
        %s220 = ssub.s32 %s9, 1
        // Predicated region
        $region63: #{mlp_forward.1} parent=61 // pred_check
          %p221 = pneg %p30
        $region64: #{mlp_forward.1} parent=61 // pred_check_branch
          %223 = sbr.rel (%p221) target = $region66
        $region65: #{mlp_forward.1} parent=61 // pred_region
          %225 = dma.done [#allocation3], 16
        $region66: #{mlp_forward.1} parent=61 // pred_fallthru
          _
        %s226 = sand.u32 %s43, 1
        %s227 = sand.u32 %s43, 1
        %s228 = smul.addr %s227, 128
        %s229 = scalar_lea.vmem [#allocation4], %s228
        // Predicated region
        $region67: #{mlp_forward.1} parent=61 // pred_check
          %p230 = pneg %p56
        $region68: #{mlp_forward.1} parent=61 // pred_check_branch
          %232 = sbr.rel (%p230) target = $region70
        $region69: #{mlp_forward.1} parent=61 // pred_region
          _
        $region70: #{mlp_forward.1} parent=61 // pred_fallthru
          _
        %233 = sfence
        %p234 = pneg %p30
        %p235 = pneg %p27
        %s236 = sand.u32 %s43, 1
        %s237 = sand.u32 %s43, 1
        %s238 = smul.addr %s237, 128
        %s239 = scalar_lea.vmem [#allocation4], %s238
        %p240 = pneg %p56
        %p241 = pneg %p53
        %p242 = pneg %p82
        %p243 = pneg %p79
        %s244 = sand.u32 %s69, 1
        %s245 = sand.u32 %s69, 1
        %s246 = smul.addr %s245, 32
        %s247 = scalar_lea.vmem [#allocation5], %s246
        %s248 = smul.u32 2, %s14
        %s249 = smul.u32 2, %s14
        %v250 = vld [vmem:[%s229] sm:$0xff]
        %v251 = vld [vmem:[%s229 + $0x8] sm:$0xff]
        %s252 = scalar_lea.vmem %s229, 16 [#allocation4]
        %v253 = vld [vmem:[%s252] sm:$0xff]
        %v254 = vld [vmem:[%s252 + $0x8] sm:$0xff]
        %s255 = scalar_lea.vmem %s229, 32 [#allocation4]
        %v256 = vld [vmem:[%s255] sm:$0xff]
        %v257 = vld [vmem:[%s255 + $0x8] sm:$0xff]
        %s258 = scalar_lea.vmem %s229, 48 [#allocation4]
        %v259 = vld [vmem:[%s258] sm:$0xff]
        %v260 = vld [vmem:[%s258 + $0x8] sm:$0xff]
        %s261 = scalar_lea.vmem %s229, 64 [#allocation4]
        %v262 = vld [vmem:[%s261] sm:$0xff]
        %v263 = vld [vmem:[%s261 + $0x8] sm:$0xff]
        %s264 = scalar_lea.vmem %s229, 80 [#allocation4]
        %v265 = vld [vmem:[%s264] sm:$0xff]
        %v266 = vld [vmem:[%s264 + $0x8] sm:$0xff]
        %s267 = scalar_lea.vmem %s229, 96 [#allocation4]
        %v268 = vld [vmem:[%s267] sm:$0xff]
        %v269 = vld [vmem:[%s267 + $0x8] sm:$0xff]
        %s270 = scalar_lea.vmem %s229, 112 [#allocation4]
        %v271 = vld [vmem:[%s270] sm:$0xff]
        %v272 = vld [vmem:[%s270 + $0x8] sm:$0xff]
        %s273 = sld [smem:[#allocation2]]
        %v274 = vstv %s273
        %v275 = vmul.f32 %v250, %v274
        %v276 = vmul.f32 %v251, %v274
        %s277 = sld [smem:[#allocation2 + $0x40]]
        %v278 = vstv %s277
        %v279 = vadd.f32 %v275, %v278
        %v280 = vadd.f32 %v276, %v278
        %s281 = sld [smem:[#allocation2 + $0x1]]
        %v282 = vstv %s281
        %v283 = vmul.f32 %v253, %v282
        %v284 = vmul.f32 %v254, %v282
        %v285 = vadd.f32 %v279, %v283
        %v286 = vadd.f32 %v280, %v284
        %s287 = sld [smem:[#allocation2 + $0x2]]
        %v288 = vstv %s287
        %v289 = vmul.f32 %v256, %v288
        %v290 = vmul.f32 %v257, %v288
        %v291 = vadd.f32 %v285, %v289
        %v292 = vadd.f32 %v286, %v290
        %s293 = sld [smem:[#allocation2 + $0x3]]
        %v294 = vstv %s293
        %v295 = vmul.f32 %v259, %v294
        %v296 = vmul.f32 %v260, %v294
        %v297 = vadd.f32 %v291, %v295
        %v298 = vadd.f32 %v292, %v296
        %s299 = sld [smem:[#allocation2 + $0x4]]
        %v300 = vstv %s299
        %v301 = vmul.f32 %v262, %v300
        %v302 = vmul.f32 %v263, %v300
        %v303 = vadd.f32 %v297, %v301
        %v304 = vadd.f32 %v298, %v302
        %s305 = sld [smem:[#allocation2 + $0x5]]
        %v306 = vstv %s305
        %v307 = vmul.f32 %v265, %v306
        %v308 = vmul.f32 %v266, %v306
        %v309 = vadd.f32 %v303, %v307
        %v310 = vadd.f32 %v304, %v308
        %s311 = sld [smem:[#allocation2 + $0x6]]
        %v312 = vstv %s311
        %v313 = vmul.f32 %v268, %v312
        %v314 = vmul.f32 %v269, %v312
        %v315 = vadd.f32 %v309, %v313
        %v316 = vadd.f32 %v310, %v314
        %s317 = sld [smem:[#allocation2 + $0x7]]
        %v318 = vstv %s317
        %v319 = vmul.f32 %v271, %v318
        %v320 = vmul.f32 %v272, %v318
        %v321 = vadd.f32 %v315, %v319
        %v322 = vadd.f32 %v316, %v320
        %s323 = sld [smem:[#allocation2 + $0x8]]
        %v324 = vstv %s323
        %v325 = vmul.f32 %v250, %v324
        %v326 = vmul.f32 %v251, %v324
        %s327 = sld [smem:[#allocation2 + $0x41]]
        %v328 = vstv %s327
        %v329 = vadd.f32 %v325, %v328
        %v330 = vadd.f32 %v326, %v328
        %s331 = sld [smem:[#allocation2 + $0x9]]
        %v332 = vstv %s331
        %v333 = vmul.f32 %v253, %v332
        %v334 = vmul.f32 %v254, %v332
        %v335 = vadd.f32 %v329, %v333
        %v336 = vadd.f32 %v330, %v334
        %s337 = sld [smem:[#allocation2 + $0xa]]
        %v338 = vstv %s337
        %v339 = vmul.f32 %v256, %v338
        %v340 = vmul.f32 %v257, %v338
        %v341 = vadd.f32 %v335, %v339
        %v342 = vadd.f32 %v336, %v340
        %s343 = sld [smem:[#allocation2 + $0xb]]
        %v344 = vstv %s343
        %v345 = vmul.f32 %v259, %v344
        %v346 = vmul.f32 %v260, %v344
        %v347 = vadd.f32 %v341, %v345
        %v348 = vadd.f32 %v342, %v346
        %s349 = sld [smem:[#allocation2 + $0xc]]
        %v350 = vstv %s349
        %v351 = vmul.f32 %v262, %v350
        %v352 = vmul.f32 %v263, %v350
        %v353 = vadd.f32 %v347, %v351
        %v354 = vadd.f32 %v348, %v352
        %s355 = sld [smem:[#allocation2 + $0xd]]
        %v356 = vstv %s355
        %v357 = vmul.f32 %v265, %v356
        %v358 = vmul.f32 %v266, %v356
        %v359 = vadd.f32 %v353, %v357
        %v360 = vadd.f32 %v354, %v358
        %s361 = sld [smem:[#allocation2 + $0xe]]
        %v362 = vstv %s361
        %v363 = vmul.f32 %v268, %v362
        %v364 = vmul.f32 %v269, %v362
        %v365 = vadd.f32 %v359, %v363
        %v366 = vadd.f32 %v360, %v364
        %s367 = sld [smem:[#allocation2 + $0xf]]
        %v368 = vstv %s367
        %v369 = vmul.f32 %v271, %v368
        %v370 = vmul.f32 %v272, %v368
        %v371 = vadd.f32 %v365, %v369
        %v372 = vadd.f32 %v366, %v370
        %s373 = sld [smem:[#allocation2 + $0x10]]
        %v374 = vstv %s373
        %v375 = vmul.f32 %v250, %v374
        %v376 = vmul.f32 %v251, %v374
        %s377 = sld [smem:[#allocation2 + $0x42]]
        %v378 = vstv %s377
        %v379 = vadd.f32 %v375, %v378
        %v380 = vadd.f32 %v376, %v378
        %s381 = sld [smem:[#allocation2 + $0x11]]
        %v382 = vstv %s381
        %v383 = vmul.f32 %v253, %v382
        %v384 = vmul.f32 %v254, %v382
        %v385 = vadd.f32 %v379, %v383
        %v386 = vadd.f32 %v380, %v384
        %s387 = sld [smem:[#allocation2 + $0x12]]
        %v388 = vstv %s387
        %v389 = vmul.f32 %v256, %v388
        %v390 = vmul.f32 %v257, %v388
        %v391 = vadd.f32 %v385, %v389
        %v392 = vadd.f32 %v386, %v390
        %s393 = sld [smem:[#allocation2 + $0x13]]
        %v394 = vstv %s393
        %v395 = vmul.f32 %v259, %v394
        %v396 = vmul.f32 %v260, %v394
        %v397 = vadd.f32 %v391, %v395
        %v398 = vadd.f32 %v392, %v396
        %s399 = sld [smem:[#allocation2 + $0x14]]
        %v400 = vstv %s399
        %v401 = vmul.f32 %v262, %v400
        %v402 = vmul.f32 %v263, %v400
        %v403 = vadd.f32 %v397, %v401
        %v404 = vadd.f32 %v398, %v402
        %s405 = sld [smem:[#allocation2 + $0x15]]
        %v406 = vstv %s405
        %v407 = vmul.f32 %v265, %v406
        %v408 = vmul.f32 %v266, %v406
        %v409 = vadd.f32 %v403, %v407
        %v410 = vadd.f32 %v404, %v408
        %s411 = sld [smem:[#allocation2 + $0x16]]
        %v412 = vstv %s411
        %v413 = vmul.f32 %v268, %v412
        %v414 = vmul.f32 %v269, %v412
        %v415 = vadd.f32 %v409, %v413
        %v416 = vadd.f32 %v410, %v414
        %s417 = sld [smem:[#allocation2 + $0x17]]
        %v418 = vstv %s417
        %v419 = vmul.f32 %v271, %v418
        %v420 = vmul.f32 %v272, %v418
        %v421 = vadd.f32 %v415, %v419
        %v422 = vadd.f32 %v416, %v420
        %s423 = sld [smem:[#allocation2 + $0x18]]
        %v424 = vstv %s423
        %v425 = vmul.f32 %v250, %v424
        %v426 = vmul.f32 %v251, %v424
        %s427 = sld [smem:[#allocation2 + $0x43]]
        %v428 = vstv %s427
        %v429 = vadd.f32 %v425, %v428
        %v430 = vadd.f32 %v426, %v428
        %s431 = sld [smem:[#allocation2 + $0x19]]
        %v432 = vstv %s431
        %v433 = vmul.f32 %v253, %v432
        %v434 = vmul.f32 %v254, %v432
        %v435 = vadd.f32 %v429, %v433
        %v436 = vadd.f32 %v430, %v434
        %s437 = sld [smem:[#allocation2 + $0x1a]]
        %v438 = vstv %s437
        %v439 = vmul.f32 %v256, %v438
        %v440 = vmul.f32 %v257, %v438
        %v441 = vadd.f32 %v435, %v439
        %v442 = vadd.f32 %v436, %v440
        %s443 = sld [smem:[#allocation2 + $0x1b]]
        %v444 = vstv %s443
        %v445 = vmul.f32 %v259, %v444
        %v446 = vmul.f32 %v260, %v444
        %v447 = vadd.f32 %v441, %v445
        %v448 = vadd.f32 %v442, %v446
        %s449 = sld [smem:[#allocation2 + $0x1c]]
        %v450 = vstv %s449
        %v451 = vmul.f32 %v262, %v450
        %v452 = vmul.f32 %v263, %v450
        %v453 = vadd.f32 %v447, %v451
        %v454 = vadd.f32 %v448, %v452
        %s455 = sld [smem:[#allocation2 + $0x1d]]
        %v456 = vstv %s455
        %v457 = vmul.f32 %v265, %v456
        %v458 = vmul.f32 %v266, %v456
        %v459 = vadd.f32 %v453, %v457
        %v460 = vadd.f32 %v454, %v458
        %s461 = sld [smem:[#allocation2 + $0x1e]]
        %v462 = vstv %s461
        %v463 = vmul.f32 %v268, %v462
        %v464 = vmul.f32 %v269, %v462
        %v465 = vadd.f32 %v459, %v463
        %v466 = vadd.f32 %v460, %v464
        %s467 = sld [smem:[#allocation2 + $0x1f]]
        %v468 = vstv %s467
        %v469 = vmul.f32 %v271, %v468
        %v470 = vmul.f32 %v272, %v468
        %v471 = vadd.f32 %v465, %v469
        %v472 = vadd.f32 %v466, %v470
        %s473 = sld [smem:[#allocation2 + $0x20]]
        %v474 = vstv %s473
        %v475 = vmul.f32 %v250, %v474
        %v476 = vmul.f32 %v251, %v474
        %s477 = sld [smem:[#allocation2 + $0x44]]
        %v478 = vstv %s477
        %v479 = vadd.f32 %v475, %v478
        %v480 = vadd.f32 %v476, %v478
        %s481 = sld [smem:[#allocation2 + $0x21]]
        %v482 = vstv %s481
        %v483 = vmul.f32 %v253, %v482
        %v484 = vmul.f32 %v254, %v482
        %v485 = vadd.f32 %v479, %v483
        %v486 = vadd.f32 %v480, %v484
        %s487 = sld [smem:[#allocation2 + $0x22]]
        %v488 = vstv %s487
        %v489 = vmul.f32 %v256, %v488
        %v490 = vmul.f32 %v257, %v488
        %v491 = vadd.f32 %v485, %v489
        %v492 = vadd.f32 %v486, %v490
        %s493 = sld [smem:[#allocation2 + $0x23]]
        %v494 = vstv %s493
        %v495 = vmul.f32 %v259, %v494
        %v496 = vmul.f32 %v260, %v494
        %v497 = vadd.f32 %v491, %v495
        %v498 = vadd.f32 %v492, %v496
        %s499 = sld [smem:[#allocation2 + $0x24]]
        %v500 = vstv %s499
        %v501 = vmul.f32 %v262, %v500
        %v502 = vmul.f32 %v263, %v500
        %v503 = vadd.f32 %v497, %v501
        %v504 = vadd.f32 %v498, %v502
        %s505 = sld [smem:[#allocation2 + $0x25]]
        %v506 = vstv %s505
        %v507 = vmul.f32 %v265, %v506
        %v508 = vmul.f32 %v266, %v506
        %v509 = vadd.f32 %v503, %v507
        %v510 = vadd.f32 %v504, %v508
        %s511 = sld [smem:[#allocation2 + $0x26]]
        %v512 = vstv %s511
        %v513 = vmul.f32 %v268, %v512
        %v514 = vmul.f32 %v269, %v512
        %v515 = vadd.f32 %v509, %v513
        %v516 = vadd.f32 %v510, %v514
        %s517 = sld [smem:[#allocation2 + $0x27]]
        %v518 = vstv %s517
        %v519 = vmul.f32 %v271, %v518
        %v520 = vmul.f32 %v272, %v518
        %v521 = vadd.f32 %v515, %v519
        %v522 = vadd.f32 %v516, %v520
        %s523 = sld [smem:[#allocation2 + $0x28]]
        %v524 = vstv %s523
        %v525 = vmul.f32 %v250, %v524
        %v526 = vmul.f32 %v251, %v524
        %s527 = sld [smem:[#allocation2 + $0x45]]
        %v528 = vstv %s527
        %v529 = vadd.f32 %v525, %v528
        %v530 = vadd.f32 %v526, %v528
        %s531 = sld [smem:[#allocation2 + $0x29]]
        %v532 = vstv %s531
        %v533 = vmul.f32 %v253, %v532
        %v534 = vmul.f32 %v254, %v532
        %v535 = vadd.f32 %v529, %v533
        %v536 = vadd.f32 %v530, %v534
        %s537 = sld [smem:[#allocation2 + $0x2a]]
        %v538 = vstv %s537
        %v539 = vmul.f32 %v256, %v538
        %v540 = vmul.f32 %v257, %v538
        %v541 = vadd.f32 %v535, %v539
        %v542 = vadd.f32 %v536, %v540
        %s543 = sld [smem:[#allocation2 + $0x2b]]
        %v544 = vstv %s543
        %v545 = vmul.f32 %v259, %v544
        %v546 = vmul.f32 %v260, %v544
        %v547 = vadd.f32 %v541, %v545
        %v548 = vadd.f32 %v542, %v546
        %s549 = sld [smem:[#allocation2 + $0x2c]]
        %v550 = vstv %s549
        %v551 = vmul.f32 %v262, %v550
        %v552 = vmul.f32 %v263, %v550
        %v553 = vadd.f32 %v547, %v551
        %v554 = vadd.f32 %v548, %v552
        %s555 = sld [smem:[#allocation2 + $0x2d]]
        %v556 = vstv %s555
        %v557 = vmul.f32 %v265, %v556
        %v558 = vmul.f32 %v266, %v556
        %v559 = vadd.f32 %v553, %v557
        %v560 = vadd.f32 %v554, %v558
        %s561 = sld [smem:[#allocation2 + $0x2e]]
        %v562 = vstv %s561
        %v563 = vmul.f32 %v268, %v562
        %v564 = vmul.f32 %v269, %v562
        %v565 = vadd.f32 %v559, %v563
        %v566 = vadd.f32 %v560, %v564
        %s567 = sld [smem:[#allocation2 + $0x2f]]
        %v568 = vstv %s567
        %v569 = vmul.f32 %v271, %v568
        %v570 = vmul.f32 %v272, %v568
        %v571 = vadd.f32 %v565, %v569
        %v572 = vadd.f32 %v566, %v570
        %s573 = sld [smem:[#allocation2 + $0x30]]
        %v574 = vstv %s573
        %v575 = vmul.f32 %v250, %v574
        %v576 = vmul.f32 %v251, %v574
        %s577 = sld [smem:[#allocation2 + $0x46]]
        %v578 = vstv %s577
        %v579 = vadd.f32 %v575, %v578
        %v580 = vadd.f32 %v576, %v578
        %s581 = sld [smem:[#allocation2 + $0x31]]
        %v582 = vstv %s581
        %v583 = vmul.f32 %v253, %v582
        %v584 = vmul.f32 %v254, %v582
        %v585 = vadd.f32 %v579, %v583
        %v586 = vadd.f32 %v580, %v584
        %s587 = sld [smem:[#allocation2 + $0x32]]
        %v588 = vstv %s587
        %v589 = vmul.f32 %v256, %v588
        %v590 = vmul.f32 %v257, %v588
        %v591 = vadd.f32 %v585, %v589
        %v592 = vadd.f32 %v586, %v590
        %s593 = sld [smem:[#allocation2 + $0x33]]
        %v594 = vstv %s593
        %v595 = vmul.f32 %v259, %v594
        %v596 = vmul.f32 %v260, %v594
        %v597 = vadd.f32 %v591, %v595
        %v598 = vadd.f32 %v592, %v596
        %s599 = sld [smem:[#allocation2 + $0x34]]
        %v600 = vstv %s599
        %v601 = vmul.f32 %v262, %v600
        %v602 = vmul.f32 %v263, %v600
        %v603 = vadd.f32 %v597, %v601
        %v604 = vadd.f32 %v598, %v602
        %s605 = sld [smem:[#allocation2 + $0x35]]
        %v606 = vstv %s605
        %v607 = vmul.f32 %v265, %v606
        %v608 = vmul.f32 %v266, %v606
        %v609 = vadd.f32 %v603, %v607
        %v610 = vadd.f32 %v604, %v608
        %s611 = sld [smem:[#allocation2 + $0x36]]
        %v612 = vstv %s611
        %v613 = vmul.f32 %v268, %v612
        %v614 = vmul.f32 %v269, %v612
        %v615 = vadd.f32 %v609, %v613
        %v616 = vadd.f32 %v610, %v614
        %s617 = sld [smem:[#allocation2 + $0x37]]
        %v618 = vstv %s617
        %v619 = vmul.f32 %v271, %v618
        %v620 = vmul.f32 %v272, %v618
        %v621 = vadd.f32 %v615, %v619
        %v622 = vadd.f32 %v616, %v620
        %s623 = sld [smem:[#allocation2 + $0x38]]
        %v624 = vstv %s623
        %v625 = vmul.f32 %v250, %v624
        %v626 = vmul.f32 %v251, %v624
        %s627 = sld [smem:[#allocation2 + $0x47]]
        %v628 = vstv %s627
        %v629 = vadd.f32 %v625, %v628
        %v630 = vadd.f32 %v626, %v628
        %s631 = sld [smem:[#allocation2 + $0x39]]
        %v632 = vstv %s631
        %v633 = vmul.f32 %v253, %v632
        %v634 = vmul.f32 %v254, %v632
        %v635 = vadd.f32 %v629, %v633
        %v636 = vadd.f32 %v630, %v634
        %s637 = sld [smem:[#allocation2 + $0x3a]]
        %v638 = vstv %s637
        %v639 = vmul.f32 %v256, %v638
        %v640 = vmul.f32 %v257, %v638
        %v641 = vadd.f32 %v635, %v639
        %v642 = vadd.f32 %v636, %v640
        %s643 = sld [smem:[#allocation2 + $0x3b]]
        %v644 = vstv %s643
        %v645 = vmul.f32 %v259, %v644
        %v646 = vmul.f32 %v260, %v644
        %v647 = vadd.f32 %v641, %v645
        %v648 = vadd.f32 %v642, %v646
        %s649 = sld [smem:[#allocation2 + $0x3c]]
        %v650 = vstv %s649
        %v651 = vmul.f32 %v262, %v650
        %v652 = vmul.f32 %v263, %v650
        %v653 = vadd.f32 %v647, %v651
        %v654 = vadd.f32 %v648, %v652
        %s655 = sld [smem:[#allocation2 + $0x3d]]
        %v656 = vstv %s655
        %v657 = vmul.f32 %v265, %v656
        %v658 = vmul.f32 %v266, %v656
        %v659 = vadd.f32 %v653, %v657
        %v660 = vadd.f32 %v654, %v658
        %s661 = sld [smem:[#allocation2 + $0x3e]]
        %v662 = vstv %s661
        %v663 = vmul.f32 %v268, %v662
        %v664 = vmul.f32 %v269, %v662
        %v665 = vadd.f32 %v659, %v663
        %v666 = vadd.f32 %v660, %v664
        %s667 = sld [smem:[#allocation2 + $0x3f]]
        %v668 = vstv %s667
        %v669 = vmul.f32 %v271, %v668
        %v670 = vmul.f32 %v272, %v668
        %v671 = vadd.f32 %v665, %v669
        %v672 = vadd.f32 %v666, %v670
        %v673 = vsub.f32 0.0, %v321
        %v674 = vsub.f32 0.0, %v322
        %v675 = vmul.f32 %v673, 1.442695
        %v676 = vpow.pop %v675
        %v677 = vmul.f32 %v674, 1.442695
        %v678 = vpow.pop %v677
        %v679 = vadd.f32 %v676, 1.0
        %v680 = vadd.f32 %v678, 1.0
        %v681 = vrcp.pop %v679
        %v682 = vrcp.pop %v680
        %v683 = vsub.f32 0.0, %v371
        %v684 = vsub.f32 0.0, %v372
        %v685 = vmul.f32 %v683, 1.442695
        %v686 = vpow.pop %v685
        %v687 = vmul.f32 %v684, 1.442695
        %v688 = vpow.pop %v687
        %v689 = vadd.f32 %v686, 1.0
        %v690 = vadd.f32 %v688, 1.0
        %v691 = vrcp.pop %v689
        %v692 = vrcp.pop %v690
        %v693 = vsub.f32 0.0, %v421
        %v694 = vsub.f32 0.0, %v422
        %v695 = vmul.f32 %v693, 1.442695
        %v696 = vpow.pop %v695
        %v697 = vmul.f32 %v694, 1.442695
        %v698 = vpow.pop %v697
        %v699 = vadd.f32 %v696, 1.0
        %v700 = vadd.f32 %v698, 1.0
        %v701 = vrcp.pop %v699
        %v702 = vrcp.pop %v700
        %v703 = vsub.f32 0.0, %v471
        %v704 = vsub.f32 0.0, %v472
        %v705 = vmul.f32 %v703, 1.442695
        %v706 = vpow.pop %v705
        %v707 = vmul.f32 %v704, 1.442695
        %v708 = vpow.pop %v707
        %v709 = vadd.f32 %v706, 1.0
        %v710 = vadd.f32 %v708, 1.0
        %v711 = vrcp.pop %v709
        %v712 = vrcp.pop %v710
        %v713 = vsub.f32 0.0, %v521
        %v714 = vsub.f32 0.0, %v522
        %v715 = vmul.f32 %v713, 1.442695
        %v716 = vpow.pop %v715
        %v717 = vmul.f32 %v714, 1.442695
        %v718 = vpow.pop %v717
        %v719 = vadd.f32 %v716, 1.0
        %v720 = vadd.f32 %v718, 1.0
        %v721 = vrcp.pop %v719
        %v722 = vrcp.pop %v720
        %v723 = vsub.f32 0.0, %v571
        %v724 = vsub.f32 0.0, %v572
        %v725 = vmul.f32 %v723, 1.442695
        %v726 = vpow.pop %v725
        %v727 = vmul.f32 %v724, 1.442695
        %v728 = vpow.pop %v727
        %v729 = vadd.f32 %v726, 1.0
        %v730 = vadd.f32 %v728, 1.0
        %v731 = vrcp.pop %v729
        %v732 = vrcp.pop %v730
        %v733 = vsub.f32 0.0, %v621
        %v734 = vsub.f32 0.0, %v622
        %v735 = vmul.f32 %v733, 1.442695
        %v736 = vpow.pop %v735
        %v737 = vmul.f32 %v734, 1.442695
        %v738 = vpow.pop %v737
        %v739 = vadd.f32 %v736, 1.0
        %v740 = vadd.f32 %v738, 1.0
        %v741 = vrcp.pop %v739
        %v742 = vrcp.pop %v740
        %v743 = vsub.f32 0.0, %v671
        %v744 = vsub.f32 0.0, %v672
        %v745 = vmul.f32 %v743, 1.442695
        %v746 = vpow.pop %v745
        %v747 = vmul.f32 %v744, 1.442695
        %v748 = vpow.pop %v747
        %v749 = vadd.f32 %v746, 1.0
        %v750 = vadd.f32 %v748, 1.0
        %v751 = vrcp.pop %v749
        %v752 = vrcp.pop %v750
        %s753 = sld [smem:[#allocation2 + $0x48]]
        %v754 = vstv %s753
        %v755 = vmul.f32 %v681, %v754
        %v756 = vmul.f32 %v682, %v754
        %s757 = sld [smem:[#allocation2 + $0x68]]
        %v758 = vstv %s757
        %v759 = vadd.f32 %v755, %v758
        %v760 = vadd.f32 %v756, %v758
        %s761 = sld [smem:[#allocation2 + $0x49]]
        %v762 = vstv %s761
        %v763 = vmul.f32 %v691, %v762
        %v764 = vmul.f32 %v692, %v762
        %v765 = vadd.f32 %v759, %v763
        %v766 = vadd.f32 %v760, %v764
        %s767 = sld [smem:[#allocation2 + $0x4a]]
        %v768 = vstv %s767
        %v769 = vmul.f32 %v701, %v768
        %v770 = vmul.f32 %v702, %v768
        %v771 = vadd.f32 %v765, %v769
        %v772 = vadd.f32 %v766, %v770
        %s773 = sld [smem:[#allocation2 + $0x4b]]
        %v774 = vstv %s773
        %v775 = vmul.f32 %v711, %v774
        %v776 = vmul.f32 %v712, %v774
        %v777 = vadd.f32 %v771, %v775
        %v778 = vadd.f32 %v772, %v776
        %s779 = sld [smem:[#allocation2 + $0x4c]]
        %v780 = vstv %s779
        %v781 = vmul.f32 %v721, %v780
        %v782 = vmul.f32 %v722, %v780
        %v783 = vadd.f32 %v777, %v781
        %v784 = vadd.f32 %v778, %v782
        %s785 = sld [smem:[#allocation2 + $0x4d]]
        %v786 = vstv %s785
        %v787 = vmul.f32 %v731, %v786
        %v788 = vmul.f32 %v732, %v786
        %v789 = vadd.f32 %v783, %v787
        %v790 = vadd.f32 %v784, %v788
        %s791 = sld [smem:[#allocation2 + $0x4e]]
        %v792 = vstv %s791
        %v793 = vmul.f32 %v741, %v792
        %v794 = vmul.f32 %v742, %v792
        %v795 = vadd.f32 %v789, %v793
        %v796 = vadd.f32 %v790, %v794
        %s797 = sld [smem:[#allocation2 + $0x4f]]
        %v798 = vstv %s797
        %v799 = vmul.f32 %v751, %v798
        %v800 = vmul.f32 %v752, %v798
        %v801 = vadd.f32 %v795, %v799
        %v802 = vadd.f32 %v796, %v800
        %s803 = sld [smem:[#allocation2 + $0x50]]
        %v804 = vstv %s803
        %v805 = vmul.f32 %v681, %v804
        %v806 = vmul.f32 %v682, %v804
        %s807 = sld [smem:[#allocation2 + $0x69]]
        %v808 = vstv %s807
        %v809 = vadd.f32 %v805, %v808
        %v810 = vadd.f32 %v806, %v808
        %s811 = sld [smem:[#allocation2 + $0x51]]
        %v812 = vstv %s811
        %v813 = vmul.f32 %v691, %v812
        %v814 = vmul.f32 %v692, %v812
        %v815 = vadd.f32 %v809, %v813
        %v816 = vadd.f32 %v810, %v814
        %s817 = sld [smem:[#allocation2 + $0x52]]
        %v818 = vstv %s817
        %v819 = vmul.f32 %v701, %v818
        %v820 = vmul.f32 %v702, %v818
        %v821 = vadd.f32 %v815, %v819
        %v822 = vadd.f32 %v816, %v820
        %s823 = sld [smem:[#allocation2 + $0x53]]
        %v824 = vstv %s823
        %v825 = vmul.f32 %v711, %v824
        %v826 = vmul.f32 %v712, %v824
        %v827 = vadd.f32 %v821, %v825
        %v828 = vadd.f32 %v822, %v826
        %s829 = sld [smem:[#allocation2 + $0x54]]
        %v830 = vstv %s829
        %v831 = vmul.f32 %v721, %v830
        %v832 = vmul.f32 %v722, %v830
        %v833 = vadd.f32 %v827, %v831
        %v834 = vadd.f32 %v828, %v832
        %s835 = sld [smem:[#allocation2 + $0x55]]
        %v836 = vstv %s835
        %v837 = vmul.f32 %v731, %v836
        %v838 = vmul.f32 %v732, %v836
        %v839 = vadd.f32 %v833, %v837
        %v840 = vadd.f32 %v834, %v838
        %s841 = sld [smem:[#allocation2 + $0x56]]
        %v842 = vstv %s841
        %v843 = vmul.f32 %v741, %v842
        %v844 = vmul.f32 %v742, %v842
        %v845 = vadd.f32 %v839, %v843
        %v846 = vadd.f32 %v840, %v844
        %s847 = sld [smem:[#allocation2 + $0x57]]
        %v848 = vstv %s847
        %v849 = vmul.f32 %v751, %v848
        %v850 = vmul.f32 %v752, %v848
        %v851 = vadd.f32 %v845, %v849
        %v852 = vadd.f32 %v846, %v850
        %s853 = sld [smem:[#allocation2 + $0x58]]
        %v854 = vstv %s853
        %v855 = vmul.f32 %v681, %v854
        %v856 = vmul.f32 %v682, %v854
        %s857 = sld [smem:[#allocation2 + $0x6a]]
        %v858 = vstv %s857
        %v859 = vadd.f32 %v855, %v858
        %v860 = vadd.f32 %v856, %v858
        %s861 = sld [smem:[#allocation2 + $0x59]]
        %v862 = vstv %s861
        %v863 = vmul.f32 %v691, %v862
        %v864 = vmul.f32 %v692, %v862
        %v865 = vadd.f32 %v859, %v863
        %v866 = vadd.f32 %v860, %v864
        %s867 = sld [smem:[#allocation2 + $0x5a]]
        %v868 = vstv %s867
        %v869 = vmul.f32 %v701, %v868
        %v870 = vmul.f32 %v702, %v868
        %v871 = vadd.f32 %v865, %v869
        %v872 = vadd.f32 %v866, %v870
        %s873 = sld [smem:[#allocation2 + $0x5b]]
        %v874 = vstv %s873
        %v875 = vmul.f32 %v711, %v874
        %v876 = vmul.f32 %v712, %v874
        %v877 = vadd.f32 %v871, %v875
        %v878 = vadd.f32 %v872, %v876
        %s879 = sld [smem:[#allocation2 + $0x5c]]
        %v880 = vstv %s879
        %v881 = vmul.f32 %v721, %v880
        %v882 = vmul.f32 %v722, %v880
        %v883 = vadd.f32 %v877, %v881
        %v884 = vadd.f32 %v878, %v882
        %s885 = sld [smem:[#allocation2 + $0x5d]]
        %v886 = vstv %s885
        %v887 = vmul.f32 %v731, %v886
        %v888 = vmul.f32 %v732, %v886
        %v889 = vadd.f32 %v883, %v887
        %v890 = vadd.f32 %v884, %v888
        %s891 = sld [smem:[#allocation2 + $0x5e]]
        %v892 = vstv %s891
        %v893 = vmul.f32 %v741, %v892
        %v894 = vmul.f32 %v742, %v892
        %v895 = vadd.f32 %v889, %v893
        %v896 = vadd.f32 %v890, %v894
        %s897 = sld [smem:[#allocation2 + $0x5f]]
        %v898 = vstv %s897
        %v899 = vmul.f32 %v751, %v898
        %v900 = vmul.f32 %v752, %v898
        %v901 = vadd.f32 %v895, %v899
        %v902 = vadd.f32 %v896, %v900
        %s903 = sld [smem:[#allocation2 + $0x60]]
        %v904 = vstv %s903
        %v905 = vmul.f32 %v681, %v904
        %v906 = vmul.f32 %v682, %v904
        %s907 = sld [smem:[#allocation2 + $0x6b]]
        %v908 = vstv %s907
        %v909 = vadd.f32 %v905, %v908
        %v910 = vadd.f32 %v906, %v908
        %s911 = sld [smem:[#allocation2 + $0x61]]
        %v912 = vstv %s911
        %v913 = vmul.f32 %v691, %v912
        %v914 = vmul.f32 %v692, %v912
        %v915 = vadd.f32 %v909, %v913
        %v916 = vadd.f32 %v910, %v914
        %s917 = sld [smem:[#allocation2 + $0x62]]
        %v918 = vstv %s917
        %v919 = vmul.f32 %v701, %v918
        %v920 = vmul.f32 %v702, %v918
        %v921 = vadd.f32 %v915, %v919
        %v922 = vadd.f32 %v916, %v920
        %s923 = sld [smem:[#allocation2 + $0x63]]
        %v924 = vstv %s923
        %v925 = vmul.f32 %v711, %v924
        %v926 = vmul.f32 %v712, %v924
        %v927 = vadd.f32 %v921, %v925
        %v928 = vadd.f32 %v922, %v926
        %s929 = sld [smem:[#allocation2 + $0x64]]
        %v930 = vstv %s929
        %v931 = vmul.f32 %v721, %v930
        %v932 = vmul.f32 %v722, %v930
        %v933 = vadd.f32 %v927, %v931
        %v934 = vadd.f32 %v928, %v932
        %s935 = sld [smem:[#allocation2 + $0x65]]
        %v936 = vstv %s935
        %v937 = vmul.f32 %v731, %v936
        %v938 = vmul.f32 %v732, %v936
        %v939 = vadd.f32 %v933, %v937
        %v940 = vadd.f32 %v934, %v938
        %s941 = sld [smem:[#allocation2 + $0x66]]
        %v942 = vstv %s941
        %v943 = vmul.f32 %v741, %v942
        %v944 = vmul.f32 %v742, %v942
        %v945 = vadd.f32 %v939, %v943
        %v946 = vadd.f32 %v940, %v944
        %s947 = sld [smem:[#allocation2 + $0x67]]
        %v948 = vstv %s947
        %v949 = vmul.f32 %v751, %v948
        %v950 = vmul.f32 %v752, %v948
        %v951 = vadd.f32 %v945, %v949
        %v952 = vadd.f32 %v946, %v950
        %v953 = vsub.f32 0.0, %v801
        %v954 = vsub.f32 0.0, %v802
        %v955 = vmul.f32 %v953, 1.442695
        %v956 = vpow.pop %v955
        %v957 = vmul.f32 %v954, 1.442695
        %v958 = vpow.pop %v957
        %v959 = vadd.f32 %v956, 1.0
        %v960 = vadd.f32 %v958, 1.0
        %v961 = vrcp.pop %v959
        %v962 = vrcp.pop %v960
        %v963 = vsub.f32 0.0, %v851
        %v964 = vsub.f32 0.0, %v852
        %v965 = vmul.f32 %v963, 1.442695
        %v966 = vpow.pop %v965
        %v967 = vmul.f32 %v964, 1.442695
        %v968 = vpow.pop %v967
        %v969 = vadd.f32 %v966, 1.0
        %v970 = vadd.f32 %v968, 1.0
        %v971 = vrcp.pop %v969
        %v972 = vrcp.pop %v970
        %v973 = vsub.f32 0.0, %v901
        %v974 = vsub.f32 0.0, %v902
        %v975 = vmul.f32 %v973, 1.442695
        %v976 = vpow.pop %v975
        %v977 = vmul.f32 %v974, 1.442695
        %v978 = vpow.pop %v977
        %v979 = vadd.f32 %v976, 1.0
        %v980 = vadd.f32 %v978, 1.0
        %v981 = vrcp.pop %v979
        %v982 = vrcp.pop %v980
        %v983 = vsub.f32 0.0, %v951
        %v984 = vsub.f32 0.0, %v952
        %v985 = vmul.f32 %v983, 1.442695
        %v986 = vpow.pop %v985
        %v987 = vmul.f32 %v984, 1.442695
        %v988 = vpow.pop %v987
        %v989 = vadd.f32 %v986, 1.0
        %v990 = vadd.f32 %v988, 1.0
        %v991 = vrcp.pop %v989
        %v992 = vrcp.pop %v990
        %s993 = sld [smem:[#allocation2 + $0x6c]]
        %v994 = vstv %s993
        %v995 = vmul.f32 %v961, %v994
        %v996 = vmul.f32 %v962, %v994
        %s997 = sld [smem:[#allocation2 + $0x74]]
        %v998 = vstv %s997
        %v999 = vadd.f32 %v995, %v998
        %v1000 = vadd.f32 %v996, %v998
        %s1001 = sld [smem:[#allocation2 + $0x6d]]
        %v1002 = vstv %s1001
        %v1003 = vmul.f32 %v971, %v1002
        %v1004 = vmul.f32 %v972, %v1002
        %v1005 = vadd.f32 %v999, %v1003
        %v1006 = vadd.f32 %v1000, %v1004
        %s1007 = sld [smem:[#allocation2 + $0x6e]]
        %v1008 = vstv %s1007
        %v1009 = vmul.f32 %v981, %v1008
        %v1010 = vmul.f32 %v982, %v1008
        %v1011 = vadd.f32 %v1005, %v1009
        %v1012 = vadd.f32 %v1006, %v1010
        %s1013 = sld [smem:[#allocation2 + $0x6f]]
        %v1014 = vstv %s1013
        %v1015 = vmul.f32 %v991, %v1014
        %v1016 = vmul.f32 %v992, %v1014
        %v1017 = vadd.f32 %v1011, %v1015
        %v1018 = vadd.f32 %v1012, %v1016
        %s1019 = sld [smem:[#allocation2 + $0x70]]
        %v1020 = vstv %s1019
        %v1021 = vmul.f32 %v961, %v1020
        %v1022 = vmul.f32 %v962, %v1020
        %s1023 = sld [smem:[#allocation2 + $0x75]]
        %v1024 = vstv %s1023
        %v1025 = vadd.f32 %v1021, %v1024
        %v1026 = vadd.f32 %v1022, %v1024
        %s1027 = sld [smem:[#allocation2 + $0x71]]
        %v1028 = vstv %s1027
        %v1029 = vmul.f32 %v971, %v1028
        %v1030 = vmul.f32 %v972, %v1028
        %v1031 = vadd.f32 %v1025, %v1029
        %v1032 = vadd.f32 %v1026, %v1030
        %s1033 = sld [smem:[#allocation2 + $0x72]]
        %v1034 = vstv %s1033
        %v1035 = vmul.f32 %v981, %v1034
        %v1036 = vmul.f32 %v982, %v1034
        %v1037 = vadd.f32 %v1031, %v1035
        %v1038 = vadd.f32 %v1032, %v1036
        %s1039 = sld [smem:[#allocation2 + $0x73]]
        %v1040 = vstv %s1039
        %v1041 = vmul.f32 %v991, %v1040
        %v1042 = vmul.f32 %v992, %v1040
        %v1043 = vadd.f32 %v1037, %v1041
        %v1044 = vadd.f32 %v1038, %v1042
        %v1045 = vsub.f32 0.0, %v1017
        %v1046 = vsub.f32 0.0, %v1018
        %v1047 = vmul.f32 %v1045, 1.442695
        %v1048 = vpow.pop %v1047
        %v1049 = vmul.f32 %v1046, 1.442695
        %v1050 = vpow.pop %v1049
        %v1051 = vadd.f32 %v1048, 1.0
        %v1052 = vadd.f32 %v1050, 1.0
        %v1053 = vrcp.pop %v1051
        %v1054 = vrcp.pop %v1052
        %v1055 = vsub.f32 0.0, %v1043
        %v1056 = vsub.f32 0.0, %v1044
        %v1057 = vmul.f32 %v1055, 1.442695
        %v1058 = vpow.pop %v1057
        %v1059 = vmul.f32 %v1056, 1.442695
        %v1060 = vpow.pop %v1059
        %v1061 = vadd.f32 %v1058, 1.0
        %v1062 = vadd.f32 %v1060, 1.0
        %v1063 = vrcp.pop %v1061
        %v1064 = vrcp.pop %v1062
        %s1065 = sld [smem:[#allocation2 + $0x76]]
        %v1066 = vstv %s1065
        %v1067 = vmul.f32 %v1053, %v1066
        %v1068 = vmul.f32 %v1054, %v1066
        %s1069 = sld [smem:[#allocation2 + $0x7a]]
        %v1070 = vstv %s1069
        %v1071 = vadd.f32 %v1067, %v1070
        %v1072 = vadd.f32 %v1068, %v1070
        %s1073 = sld [smem:[#allocation2 + $0x77]]
        %v1074 = vstv %s1073
        %v1075 = vmul.f32 %v1063, %v1074
        %v1076 = vmul.f32 %v1064, %v1074
        %v1077 = vadd.f32 %v1071, %v1075
        %v1078 = vadd.f32 %v1072, %v1076
        %s1079 = sld [smem:[#allocation2 + $0x78]]
        %v1080 = vstv %s1079
        %v1081 = vmul.f32 %v1053, %v1080
        %v1082 = vmul.f32 %v1054, %v1080
        %s1083 = sld [smem:[#allocation2 + $0x7b]]
        %v1084 = vstv %s1083
        %v1085 = vadd.f32 %v1081, %v1084
        %v1086 = vadd.f32 %v1082, %v1084
        %s1087 = sld [smem:[#allocation2 + $0x79]]
        %v1088 = vstv %s1087
        %v1089 = vmul.f32 %v1063, %v1088
        %v1090 = vmul.f32 %v1064, %v1088
        %v1091 = vadd.f32 %v1085, %v1089
        %v1092 = vadd.f32 %v1086, %v1090
        %1093 = vst [vmem:[%s247] sm:$0xff] %v1077
        %1094 = vst [vmem:[%s247 + $0x8] sm:$0xff] %v1078
        %s1095 = scalar_lea.vmem %s247, 16 [#allocation5]
        %1096 = vst [vmem:[%s1095] sm:$0xff] %v1091
        %1097 = vst [vmem:[%s1095 + $0x8] sm:$0xff] %v1092
        %s1098 = sand.u32 %s69, 1
        %s1099 = sand.u32 %s69, 1
        %s1100 = smul.addr %s1099, 32
        %s1101 = scalar_lea.vmem [#allocation5], %s1100
        // Predicated region
        $region71: #{mlp_forward.1} parent=61 // pred_check
          %p1102 = pneg %p79
        $region72: #{mlp_forward.1} parent=61 // pred_check_branch
          %1104 = sbr.rel (%p1102) target = $region74
        $region73: #{mlp_forward.1} parent=61 // pred_region
          %s1105 = smul.u32 2, %s14
          %s1106 = smul.addr %s1105, 8
          %s1107 = scalar_lea.vmem %s2, %s1106
          // Predicated region
          $region75: #{mlp_forward.1} parent=73 // pred_check
            _
          $region76: #{mlp_forward.1} parent=73 // pred_check_branch
            %1109 = sbr.rel (0) target = $region78
          $region77: #{mlp_forward.1} parent=73 // pred_region
            // Predicated region
            $region79: #{mlp_forward.1} parent=77 // pred_check
              _
            $region80: #{mlp_forward.1} parent=77 // pred_check_branch
              %1111 = sbr.rel (0) target = $region82
            $region81: #{mlp_forward.1} parent=77 // pred_region
              // Predicated region
              $region94: #{mlp_forward.1} parent=81 // pred_check
                _
              $region95: #{mlp_forward.1} parent=81 // pred_check_branch
                %1133 = sbr.rel (0) target = $region97
              $region96: #{mlp_forward.1} parent=81 // pred_region
                loop: start=0, step=1, limit=1
                $region98: #{mlp_forward.1} parent=96 // loop_pre_header
                  _
                $region99: #{mlp_forward.1} parent=96 // loop_header
                  %s1135 = sphi 0, %s1139
                  %p1136 = scmp.ge.s32.totalorder %s1135, 1
                  %s1140 = sphi %s1101, %s1101
                  %s1141 = sphi %s1107, %s1107
                $region100: #{mlp_forward.1} parent=96 // loop_header_branch
                  %1138 = sbr.rel (%p1136) target = $region104
                $region101: #{mlp_forward.1} parent=96 // loop_body
                  %v1142 = vld [vmem:[%s1140] sm:$0xff]
                  %1143 = vst [vmem:[%s1141] sm:$0xff] %v1142
                  %v1144 = vld [vmem:[%s1140 + $0x8] sm:$0xff]
                  %1145 = vst [vmem:[%s1141 + $0x8] sm:$0xff] %v1144
                  %v1146 = vld [vmem:[%s1140 + $0x10] sm:$0xff]
                  %1147 = vst [vmem:[%s1141 + $0x20] sm:$0xff] %v1146
                  %v1148 = vld [vmem:[%s1140 + $0x18] sm:$0xff]
                  %1149 = vst [vmem:[%s1141 + $0x28] sm:$0xff] %v1148
                $region102: #{mlp_forward.1} parent=96 // loop_footer
                  %s1139 = sadd.s32 1, %s1135
                $region103: #{mlp_forward.1} parent=96 // loop_footer_branch
                  %1134 = sbr.rel target = $region99
                $region104: #{mlp_forward.1} parent=96 // loop_exit
                  _
              $region97: #{mlp_forward.1} parent=81 // pred_fallthru
                _
              // Predicated region
              $region105: #{mlp_forward.1} parent=81 // pred_check
                _
              $region106: #{mlp_forward.1} parent=81 // pred_check_branch
                %1151 = sbr.rel target = $region108
              $region107: #{mlp_forward.1} parent=81 // pred_region
                _
              $region108: #{mlp_forward.1} parent=81 // pred_fallthru
                _
            $region82: #{mlp_forward.1} parent=77 // pred_fallthru
              _
            // Predicated region
            $region83: #{mlp_forward.1} parent=77 // pred_check
              _
            $region84: #{mlp_forward.1} parent=77 // pred_check_branch
              %1113 = sbr.rel target = $region86
            $region85: #{mlp_forward.1} parent=77 // pred_region
              %s1115 = ssub.s32 256, 1
              loop: start=0, step=1, limit=1
              $region87: #{mlp_forward.1} parent=85 // loop_pre_header
                _
              $region88: #{mlp_forward.1} parent=85 // loop_header
                %s1117 = sphi 0, %s1121
                %p1118 = scmp.ge.s32.totalorder %s1117, 1
                %s1122 = sphi %s1101, %s1101
                %s1123 = sphi %s1107, %s1107
              $region89: #{mlp_forward.1} parent=85 // loop_header_branch
                %1120 = sbr.rel (%p1118) target = $region93
              $region90: #{mlp_forward.1} parent=85 // loop_body
                %v1124 = vld [vmem:[%s1122] sm:%s1115]
                %1125 = vst [vmem:[%s1123] sm:%s1115] %v1124
                %v1126 = vld [vmem:[%s1122 + $0x8] sm:%s1115]
                %1127 = vst [vmem:[%s1123 + $0x8] sm:%s1115] %v1126
                %v1128 = vld [vmem:[%s1122 + $0x10] sm:%s1115]
                %1129 = vst [vmem:[%s1123 + $0x20] sm:%s1115] %v1128
                %v1130 = vld [vmem:[%s1122 + $0x18] sm:%s1115]
                %1131 = vst [vmem:[%s1123 + $0x28] sm:%s1115] %v1130
              $region91: #{mlp_forward.1} parent=85 // loop_footer
                %s1121 = sadd.s32 1, %s1117
              $region92: #{mlp_forward.1} parent=85 // loop_footer_branch
                %1116 = sbr.rel target = $region88
              $region93: #{mlp_forward.1} parent=85 // loop_exit
                _
            $region86: #{mlp_forward.1} parent=77 // pred_fallthru
              _
          $region78: #{mlp_forward.1} parent=73 // pred_fallthru
            _
          %1152 = vnop
        $region74: #{mlp_forward.1} parent=61 // pred_fallthru
          _
      $region62: #{mlp_forward.1} parent=5 // pred_fallthru
        _
      %p1153 = scmp.le.s32.totalorder 2, %s9
      // Predicated region
      $region109: #{mlp_forward.1} parent=5 // pred_check
        %p1154 = pneg %p1153
      $region110: #{mlp_forward.1} parent=5 // pred_check_branch
        %1156 = sbr.rel (%p1154) target = $region112
      $region111: #{mlp_forward.1} parent=5 // pred_region
        %s1157 = ssub.s32 %s9, 2
        // Predicated region
        $region113: #{mlp_forward.1} parent=111 // pred_check
          %p1158 = pneg %p85
        $region114: #{mlp_forward.1} parent=111 // pred_check_branch
          %1160 = sbr.rel (%p1158) target = $region116
        $region115: #{mlp_forward.1} parent=111 // pred_region
          %s1161 = sand.u32 %s70, 1
          %s1162 = sand.u32 %s70, 1
          %s1163 = smul.addr %s1162, 32
          %s1164 = scalar_lea.vmem [#allocation5], %s1163
        $region116: #{mlp_forward.1} parent=111 // pred_fallthru
          _
      $region112: #{mlp_forward.1} parent=5 // pred_fallthru
        _
    $region6: #{mlp_forward.1} parent=1 // loop_footer
      %s13 = sadd.s32 1, %s9
    $region7: #{mlp_forward.1} parent=1 // loop_footer_branch
      %8 = sbr.rel target = $region3
    $region8: #{mlp_forward.1} parent=1 // loop_exit
      _
    %1165 = vsyncpa [#allocation3], 1
    %s1166 = scalar_lea.sflag [#allocation3], 1
    %1167 = vsyncpa %s1166, 1

</llo_original>
